<compile_context>
chip_gen: v5e
topology: v5e:2x2
jax: 0.10.0
libtpu: 0.0.40
codegen_flags: <defaults>
</compile_context>

<pallas_src>
import functools

import jax
import jax.numpy as jnp
from jax.experimental import pallas as pl
from jax.experimental.pallas import tpu as pltpu

# --------------------- hyperparameters (mirrors `args`) ---------------------
INPUT_DIM  = 6          # args.input_dim
PRED_DIM   = 4          # args.pred_dim
HIDDEN     = 32         # args.hidden_size
LATENT_DIM = 8          # args.LATENT_DIM
K_SAMPLES  = 8          # K
SEQ_LEN    = 8          # target_y time steps
BATCH      = 2
NU         = 0.0        # args.nu
SIGMA      = 1.3        # args.sigma
DEC_WITH_Z = True       # args.DEC_WITH_Z
USE_BF16_MATMUL = True  # bf16 MXU operands (recommended on v6e/v7x); f32 accumulate

_HH = HIDDEN // 2
_BBLK = 8               # batch rows per grid step (one sublane group)

# ----- static row offsets inside the packed [SLAB_ROWS, 128] weight slab -----
OFF_PW1, OFF_PB1 = 0, 32        # p_z_x:  [32,128], [1,128]
OFF_PW2, OFF_PB2 = 40, 168      #         [128,64], [1,64]
OFF_PW3, OFF_PB3 = 176, 240     #         [64,16],  [1,16]
OFF_QW1, OFF_QB1 = 248, 312     # q_z_xy: [64,128], [1,128]
OFF_QW2, OFF_QB2 = 320, 448     #         [128,64], [1,64]
OFF_QW3, OFF_QB3 = 456, 520     #         [64,16],  [1,16]
OFF_EW,  OFF_EB  = 528, 536     # node_future_encoder_h (padded to 2*Hh out)
OFF_GWI, OFF_GBI = 544, 552     # fused GRU input weight [8,96], bias [1,96]
OFF_GWH, OFF_GBN = 560, 592     # fused GRU hidden weight [32,96], n-gate hidden bias [1,32]
SLAB_ROWS = 600


# ----------------------------- fused Pallas kernel ---------------------------
def _bitrap_fused_kernel(hx_ref, last_ref, tgt_ref, ks_ref, w_ref,
                         z_ref, kld_ref, *, with_target: bool, use_bf16: bool):
    f32 = jnp.float32
    L, H, Hh = LATENT_DIM, HIDDEN, _HH

    def dot(a, b):
        if use_bf16:
            a = a.astype(jnp.bfloat16)
            b = b.astype(jnp.bfloat16)
        return jnp.dot(a, b, preferred_element_type=f32)

    def w(row, nrows, ncols):
        blk = w_ref[row:row + nrows, :]              # static, 8-row-aligned slice
        return blk if ncols == 128 else blk[:, :ncols]

    h_x = hx_ref[...]                                # [BB, H]
    BB = h_x.shape[0]

    # ---- p_z_x: Linear(H,128) -> ReLU -> Linear(128,64) -> ReLU -> Linear(64,2L)
    p = jnp.maximum(dot(h_x, w(OFF_PW1, H, 128)) + w(OFF_PB1, 1, 128), 0.0)
    p = jnp.maximum(dot(p, w(OFF_PW2, 128, 64)) + w(OFF_PB2, 1, 64), 0.0)
    zp = dot(p, w(OFF_PW3, 64, 2 * L)) + w(OFF_PB3, 1, 2 * L)
    mu_p, lv_p = zp[:, :L], zp[:, L:]

    if with_target:
        # ---- initial hidden [hf | hb]: enc weight is output-padded to 2*Hh with
        # zero columns for hb, so one matmul+ReLU gives [relu(last@W+b) | 0].
        h = jnp.maximum(dot(last_ref[...], w(OFF_EW, INPUT_DIM, 2 * Hh))
                        + w(OFF_EB, 1, 2 * Hh), 0.0)                   # [BB, 2Hh]

        # ---- fused bidirectional GRU (both directions per serial level) ------
        tgt = tgt_ref[...]                            # [T, BB, 2P]: rows = [x_t | x_{T-1-t}]
        T = tgt.shape[0]
        tgt2d = tgt.reshape(T * BB, 2 * PRED_DIM)

        # Hoisted input projection: one matmul for all steps and both directions,
        # biases (b_ih + b_hh for r,z) already folded into the slab.
        gi_all = dot(tgt2d, w(OFF_GWI, 2 * PRED_DIM, 6 * Hh)) + w(OFF_GBI, 1, 6 * Hh)

        w_hh = w(OFF_GWH, 2 * Hh, 6 * Hh)             # block-diag over directions
        if use_bf16:
            w_hh = w_hh.astype(jnp.bfloat16)          # cast once, not per step
        bhn = w(OFF_GBN, 1, 2 * Hh)                   # [bhn_f | bhn_b]

        # gate lane layout: [r_f | r_b | z_f | z_b | n_f | n_b], each Hh wide.
        for t in range(T):
            gi = gi_all[t * BB:(t + 1) * BB, :]       # 8-sublane-aligned slice
            gh = dot(h, w_hh)                         # single MXU pass per step
            rz = jax.nn.sigmoid(gi[:, :4 * Hh] + gh[:, :4 * Hh])   # one EUP push for all r,z
            r = rz[:, :2 * Hh]
            zg = rz[:, 2 * Hh:]
            n = jnp.tanh(gi[:, 4 * Hh:] + r * (gh[:, 4 * Hh:] + bhn))
            h = (1.0 - zg) * n + zg * h               # h stays [hf | hb]

        # ---- q_z_xy on cat([h_x, hf, hb]); split first layer -> no lane concat.
        q = (dot(h_x, w(OFF_QW1, H, 128))
             + dot(h, w(OFF_QW1 + H, H, 128))
             + w(OFF_QB1, 1, 128))
        q = jnp.maximum(q, 0.0)
        q = jnp.maximum(dot(q, w(OFF_QW2, 128, 64)) + w(OFF_QB2, 1, 64), 0.0)
        zq = dot(q, w(OFF_QW3, 64, 2 * L)) + w(OFF_QB3, 1, 2 * L)
        mu, lv = zq[:, :L], zq[:, L:]

        # ---- per-row KLD(q || p) sums (mean + clamp done in the wrapper) ------
        kld_el = 0.5 * (jnp.exp(lv - lv_p)
                        + (mu_p - mu) ** 2 * jnp.exp(-lv_p)
                        - 1.0 + (lv_p - lv))
        kld_ref[...] = jnp.sum(kld_el, axis=-1, keepdims=True)
    else:
        mu, lv = mu_p, lv_p
        kld_ref[...] = jnp.zeros_like(kld_ref)

    # ---- sampling: Z = mu + K_samples * std -------------------------------
    std = jnp.exp(0.5 * lv)                           # [BB, L]
    z_ref[...] = mu[:, None, :] + ks_ref[...] * std[:, None, :]


# --------------------------- parameter construction -------------------------
def init_params(key):
    ks = jax.random.split(key, 16)

    def lin(k, fan_in, fan_out):
        k1, k2 = jax.random.split(k)
        bound = 1.0 / jnp.sqrt(jnp.float32(fan_in))
        wgt = jax.random.uniform(k1, (fan_in, fan_out), jnp.float32, -bound, bound)
        b = jax.random.uniform(k2, (1, fan_out), jnp.float32, -bound, bound)
        return wgt, b

    def gru_dir(k):
        k1, k2, k3, k4 = jax.random.split(k, 4)
        bound = 1.0 / jnp.sqrt(jnp.float32(_HH))
        wi = jax.random.uniform(k1, (PRED_DIM, 3 * _HH), jnp.float32, -bound, bound)
        wh = jax.random.uniform(k2, (_HH, 3 * _HH), jnp.float32, -bound, bound)
        bi = jax.random.uniform(k3, (1, 3 * _HH), jnp.float32, -bound, bound)
        bh = jax.random.uniform(k4, (1, 3 * _HH), jnp.float32, -bound, bound)
        return wi, wh, bi, bh

    p = {}
    p['enc_h'] = lin(ks[0], INPUT_DIM, _HH)            # node_future_encoder_h
    p['gru_f'] = gru_dir(ks[1])                        # gt_goal_encoder forward dir
    p['gru_b'] = gru_dir(ks[2])                        # gt_goal_encoder backward dir
    p['p1'] = lin(ks[3], HIDDEN, 128)                  # p_z_x
    p['p2'] = lin(ks[4], 128, 64)
    p['p3'] = lin(ks[5], 64, 2 * LATENT_DIM)
    p['q1'] = lin(ks[6], 2 * HIDDEN, 128)              # q_z_xy
    p['q2'] = lin(ks[7], 128, 64)
    p['q3'] = lin(ks[8], 64, 2 * LATENT_DIM)
    return p


def pack_params(params):
    """Fold constant biases + build block-diagonal fused GRU weights and pack
    everything into one [SLAB_ROWS, 128] f32 slab (single DMA into the kernel)."""
    Hh = _HH
    slab = jnp.zeros((SLAB_ROWS, 128), jnp.float32)

    def put(s, row, arr):
        arr = jnp.asarray(arr, jnp.float32)
        return s.at[row:row + arr.shape[0], :arr.shape[1]].set(arr)

    def scatter_gates(src, fwd):
        # src [rows, 3*Hh] in PyTorch (r,z,n) order -> [rows, 6*Hh] in the fused
        # lane layout [r_f | r_b | z_f | z_b | n_f | n_b].
        out = jnp.zeros((src.shape[0], 6 * Hh), jnp.float32)
        off = 0 if fwd else Hh
        out = out.at[:, off:off + Hh].set(src[:, 0:Hh])                      # r
        out = out.at[:, 2 * Hh + off:2 * Hh + off + Hh].set(src[:, Hh:2 * Hh])  # z
        out = out.at[:, 4 * Hh + off:4 * Hh + off + Hh].set(src[:, 2 * Hh:])    # n
        return out

    pw1, pb1 = params['p1']; pw2, pb2 = params['p2']; pw3, pb3 = params['p3']
    qw1, qb1 = params['q1']; qw2, qb2 = params['q2']; qw3, qb3 = params['q3']
    ew, eb = params['enc_h']
    wi_f, wh_f, bi_f, bh_f = params['gru_f']
    wi_b, wh_b, bi_b, bh_b = params['gru_b']

    slab = put(slab, OFF_PW1, pw1); slab = put(slab, OFF_PB1, pb1)
    slab = put(slab, OFF_PW2, pw2); slab = put(slab, OFF_PB2, pb2)
    slab = put(slab, OFF_PW3, pw3); slab = put(slab, OFF_PB3, pb3)
    slab = put(slab, OFF_QW1, qw1); slab = put(slab, OFF_QB1, qb1)
    slab = put(slab, OFF_QW2, qw2); slab = put(slab, OFF_QB2, qb2)
    slab = put(slab, OFF_QW3, qw3); slab = put(slab, OFF_QB3, qb3)

    # node_future_encoder_h output-padded to 2*Hh so relu(last@W+b) directly
    # yields the fused initial hidden [hf | 0] (backward dir starts at zero).
    ew_pad = jnp.zeros((INPUT_DIM, 2 * Hh), jnp.float32).at[:, :Hh].set(ew)
    eb_pad = jnp.zeros((1, 2 * Hh), jnp.float32).at[:, :Hh].set(eb)
    slab = put(slab, OFF_EW, ew_pad); slab = put(slab, OFF_EB, eb_pad)

    # Fused bidirectional GRU: block-diagonal weights + pre-folded biases.
    w_in = jnp.zeros((2 * PRED_DIM, 6 * Hh), jnp.float32)
    w_in = w_in.at[:PRED_DIM].set(scatter_gates(wi_f, True))
    w_in = w_in.at[PRED_DIM:].set(scatter_gates(wi_b, False))
    bh_f_rz = bh_f.at[:, 2 * Hh:].set(0.0)     # b_hh(n) must stay inside r*(...)
    bh_b_rz = bh_b.at[:, 2 * Hh:].set(0.0)
    b_in = (scatter_gates(bi_f, True) + scatter_gates(bi_b, False)
            + scatter_gates(bh_f_rz, True) + scatter_gates(bh_b_rz, False))
    w_hh = jnp.zeros((2 * Hh, 6 * Hh), jnp.float32)
    w_hh = w_hh.at[:Hh].set(scatter_gates(wh_f, True))
    w_hh = w_hh.at[Hh:].set(scatter_gates(wh_b, False))
    bhn = jnp.concatenate([bh_f[:, 2 * Hh:], bh_b[:, 2 * Hh:]], axis=-1)

    slab = put(slab, OFF_GWI, w_in); slab = put(slab, OFF_GBI, b_in)
    slab = put(slab, OFF_GWH, w_hh); slab = put(slab, OFF_GBN, bhn)
    return slab


# ------------------------------- forward pass -------------------------------
@functools.partial(jax.jit, static_argnames=("K", "use_bf16"))
def bitrap_np_forward(w_slab, h_x, last_input, K, target_y, sample_key,
                      use_bf16=USE_BF16_MATMUL):
    """Mirror of BiTraPNP.forward (z_mode=False). One fused pallas_call."""
    B = h_x.shape[0]
    with_target = target_y is not None

    # torch.normal(nu, sigma, (B, K, L)) equivalent.
    k_samples = NU + SIGMA * jax.random.normal(
        sample_key, (B, K, LATENT_DIM), jnp.float32)
    # reconstructed_probability: Normal(0,1).log_prob(x).exp().mean(-1) — depends
    # only on the samples, so it lives in the wrapper (out of the kernel).
    prob = jnp.mean((1.0 / jnp.sqrt(2.0 * jnp.pi)) * jnp.exp(-0.5 * k_samples ** 2),
                    axis=-1)

    # Zero-pad batch to a multiple of 8 -> sublane-aligned per-step GRU slices
    # and a clean ("parallel",) grid over 8-row blocks (v7x two-TC split).
    BP = ((B + _BBLK - 1) // _BBLK) * _BBLK
    pad = BP - B
    hx_p = jnp.pad(h_x, ((0, pad), (0, 0)))
    last_p = jnp.pad(last_input, ((0, pad), (0, 0)))
    ks_p = jnp.pad(k_samples, ((0, pad), (0, 0), (0, 0)))

    if with_target:
        T = target_y.shape[1]
        tgt_p = jnp.pad(target_y, ((0, pad), (0, 0), (0, 0)))
        tgt_tm = jnp.transpose(tgt_p, (1, 0, 2))                   # [T, BP, P]
        # Row t holds [x_t | x_{T-1-t}] so one block-diag matmul gives both
        # directions' input projections per serial step.
        tgt_fb = jnp.concatenate([tgt_tm, tgt_tm[::-1]], axis=-1)  # [T, BP, 2P]
    else:
        T = 1
        tgt_fb = jnp.zeros((1, BP, 2 * PRED_DIM), jnp.float32)

    kernel = functools.partial(_bitrap_fused_kernel,
                               with_target=with_target, use_bf16=use_bf16)
    z_out, kld_rows = pl.pallas_call(
        kernel,
        grid=(BP // _BBLK,),
        out_shape=(jax.ShapeDtypeStruct((BP, K, LATENT_DIM), jnp.float32),   # Z
                   jax.ShapeDtypeStruct((BP, 1), jnp.float32)),              # per-row KLD
        in_specs=[
            pl.BlockSpec((_BBLK, HIDDEN), lambda i: (i, 0)),
            pl.BlockSpec((_BBLK, INPUT_DIM), lambda i: (i, 0)),
            pl.BlockSpec((T, _BBLK, 2 * PRED_DIM), lambda i: (0, i, 0)),
            pl.BlockSpec((_BBLK, K, LATENT_DIM), lambda i: (i, 0, 0)),
            pl.BlockSpec((SLAB_ROWS, 128), lambda i: (0, 0)),     # weight slab (1 DMA)
        ],
        out_specs=(
            pl.BlockSpec((_BBLK, K, LATENT_DIM), lambda i: (i, 0, 0)),
            pl.BlockSpec((_BBLK, 1), lambda i: (i, 0)),
        ),
        compiler_params=pltpu.CompilerParams(dimension_semantics=("parallel",)),
    )(hx_p, last_p, tgt_fb, ks_p, w_slab)

    Z = z_out[:B]
    if with_target:
        kld = jnp.maximum(jnp.mean(kld_rows[:B, 0]), 0.001)
    else:
        kld = jnp.float32(0.0)

    if DEC_WITH_Z:
        dec_h = jnp.concatenate(
            [jnp.broadcast_to(h_x[:, None, :], (B, K, HIDDEN)), Z], axis=-1)
    else:
        dec_h = h_x
    return dec_h, kld, prob


# ----------------------------------- main ------------------------------------
if __name__ == "__main__":
    key = jax.random.PRNGKey(0)
    pkey, xkey, lkey, tkey, skey = jax.random.split(key, 5)

    params = init_params(pkey)
    w_slab = pack_params(params)

    h_x = jax.random.normal(xkey, (BATCH, HIDDEN), jnp.float32)
    last_input = jax.random.normal(lkey, (BATCH, INPUT_DIM), jnp.float32)
    target_y = jax.random.normal(tkey, (BATCH, SEQ_LEN, PRED_DIM), jnp.float32)

    dec_h, kld, prob = bitrap_np_forward(w_slab, h_x, last_input, K_SAMPLES,
                                         target_y, skey)
    jax.block_until_ready((dec_h, kld, prob))

    assert dec_h.shape == (BATCH, K_SAMPLES, HIDDEN + LATENT_DIM)
    assert prob.shape == (BATCH, K_SAMPLES)
    assert kld.shape == ()
    assert bool(jnp.isfinite(kld))
    assert bool(jnp.all(jnp.isfinite(dec_h)))
    print("KERNEL_OK")
</pallas_src>

<mosaic_0001>
module attributes {stable_mosaic.version = 11 : i64} {
  func.func @_bitrap_fused_kernel(%arg0: i32, %arg1: memref<8x32xf32, #tpu.memory_space<vmem>>, %arg2: memref<8x6xf32, #tpu.memory_space<vmem>>, %arg3: memref<8x8x8xf32, #tpu.memory_space<vmem>>, %arg4: memref<8x8x8xf32, #tpu.memory_space<vmem>>, %arg5: memref<600x128xf32, #tpu.memory_space<vmem>>, %arg6: memref<8x8x8xf32, #tpu.memory_space<vmem>>, %arg7: memref<8x1xf32, #tpu.memory_space<vmem>>) attributes {dimension_semantics = [#tpu.dimension_semantics<parallel>], iteration_bounds = array<i64: 1>, scalar_prefetch = 0 : i64, scratch_operands = 0 : i64, tpu.core_type = #tpu.core_type<tc>, window_params = [{transform_indices = @transform_0, window_bounds = array<i64: 8, 32>}, {transform_indices = @transform_1, window_bounds = array<i64: 8, 6>}, {transform_indices = @transform_2, window_bounds = array<i64: 8, 8, 8>}, {transform_indices = @transform_3, window_bounds = array<i64: 8, 8, 8>}, {pipeline_mode = #tpu.pipeline_mode<synchronous>, transform_indices = @transform_4, window_bounds = array<i64: 600, 128>}, {transform_indices = @transform_5, window_bounds = array<i64: 8, 8, 8>}, {transform_indices = @transform_6, window_bounds = array<i64: 8, 1>}]} {
    %c0 = arith.constant 0 : index
    %c0_0 = arith.constant 0 : index
    %0 = vector.load %arg1[%c0, %c0_0] : memref<8x32xf32, #tpu.memory_space<vmem>>, vector<8x32xf32>
    %c0_1 = arith.constant 0 : index
    %c0_2 = arith.constant 0 : index
    %1 = vector.load %arg5[%c0_1, %c0_2] : memref<600x128xf32, #tpu.memory_space<vmem>>, vector<32x128xf32>
    %2 = arith.truncf %0 : vector<8x32xf32> to vector<8x32xbf16>
    %3 = arith.truncf %1 : vector<32x128xf32> to vector<32x128xbf16>
    %cst = arith.constant dense<0.000000e+00> : vector<8x128xf32>
    %4 = tpu.matmul %2, %3, %cst {dimension_numbers = #tpu.dot_dimension_numbers<[1], [0], [0], [1], [0, 0, 1, 1], [], []>} : vector<8x32xbf16>, vector<32x128xbf16>, vector<8x128xf32> -> vector<8x128xf32>
    %c32 = arith.constant 32 : index
    %c0_3 = arith.constant 0 : index
    %5 = vector.load %arg5[%c32, %c0_3] : memref<600x128xf32, #tpu.memory_space<vmem>>, vector<1x128xf32>
    %6 = vector.broadcast %5 : vector<1x128xf32> to vector<8x128xf32>
    %7 = arith.addf %4, %6 : vector<8x128xf32>
    %cst_4 = arith.constant 0.000000e+00 : f32
    %8 = vector.broadcast %cst_4 : f32 to vector<8x128xf32>
    %9 = arith.maximumf %7, %8 : vector<8x128xf32>
    %c40 = arith.constant 40 : index
    %c0_5 = arith.constant 0 : index
    %10 = vector.load %arg5[%c40, %c0_5] : memref<600x128xf32, #tpu.memory_space<vmem>>, vector<128x128xf32>
    %11 = vector.extract_strided_slice %10 {offsets = [0, 0], sizes = [128, 64], strides = [1, 1]} : vector<128x128xf32> to vector<128x64xf32>
    %12 = arith.truncf %9 : vector<8x128xf32> to vector<8x128xbf16>
    %13 = arith.truncf %11 : vector<128x64xf32> to vector<128x64xbf16>
    %cst_6 = arith.constant dense<0.000000e+00> : vector<8x64xf32>
    %14 = tpu.matmul %12, %13, %cst_6 {dimension_numbers = #tpu.dot_dimension_numbers<[1], [0], [0], [1], [0, 0, 1, 1], [], []>} : vector<8x128xbf16>, vector<128x64xbf16>, vector<8x64xf32> -> vector<8x64xf32>
    %c168 = arith.constant 168 : index
    %c0_7 = arith.constant 0 : index
    %15 = vector.load %arg5[%c168, %c0_7] : memref<600x128xf32, #tpu.memory_space<vmem>>, vector<1x128xf32>
    %16 = vector.extract_strided_slice %15 {offsets = [0, 0], sizes = [1, 64], strides = [1, 1]} : vector<1x128xf32> to vector<1x64xf32>
    %17 = vector.broadcast %16 : vector<1x64xf32> to vector<8x64xf32>
    %18 = arith.addf %14, %17 : vector<8x64xf32>
    %cst_8 = arith.constant 0.000000e+00 : f32
    %19 = vector.broadcast %cst_8 : f32 to vector<8x64xf32>
    %20 = arith.maximumf %18, %19 : vector<8x64xf32>
    %c176 = arith.constant 176 : index
    %c0_9 = arith.constant 0 : index
    %21 = vector.load %arg5[%c176, %c0_9] : memref<600x128xf32, #tpu.memory_space<vmem>>, vector<64x128xf32>
    %22 = vector.extract_strided_slice %21 {offsets = [0, 0], sizes = [64, 16], strides = [1, 1]} : vector<64x128xf32> to vector<64x16xf32>
    %23 = arith.truncf %20 : vector<8x64xf32> to vector<8x64xbf16>
    %24 = arith.truncf %22 : vector<64x16xf32> to vector<64x16xbf16>
    %cst_10 = arith.constant dense<0.000000e+00> : vector<8x16xf32>
    %25 = tpu.matmul %23, %24, %cst_10 {dimension_numbers = #tpu.dot_dimension_numbers<[1], [0], [0], [1], [0, 0, 1, 1], [], []>} : vector<8x64xbf16>, vector<64x16xbf16>, vector<8x16xf32> -> vector<8x16xf32>
    %c240 = arith.constant 240 : index
    %c0_11 = arith.constant 0 : index
    %26 = vector.load %arg5[%c240, %c0_11] : memref<600x128xf32, #tpu.memory_space<vmem>>, vector<1x128xf32>
    %27 = vector.extract_strided_slice %26 {offsets = [0, 0], sizes = [1, 16], strides = [1, 1]} : vector<1x128xf32> to vector<1x16xf32>
    %28 = vector.broadcast %27 : vector<1x16xf32> to vector<8x16xf32>
    %29 = arith.addf %25, %28 : vector<8x16xf32>
    %30 = vector.extract_strided_slice %29 {offsets = [0, 0], sizes = [8, 8], strides = [1, 1]} : vector<8x16xf32> to vector<8x8xf32>
    %31 = vector.extract_strided_slice %29 {offsets = [0, 8], sizes = [8, 8], strides = [1, 1]} : vector<8x16xf32> to vector<8x8xf32>
    %c0_12 = arith.constant 0 : index
    %c0_13 = arith.constant 0 : index
    %32 = vector.load %arg2[%c0_12, %c0_13] : memref<8x6xf32, #tpu.memory_space<vmem>>, vector<8x6xf32>
    %c528 = arith.constant 528 : index
    %c0_14 = arith.constant 0 : index
    %33 = vector.load %arg5[%c528, %c0_14] : memref<600x128xf32, #tpu.memory_space<vmem>>, vector<6x128xf32>
    %34 = vector.extract_strided_slice %33 {offsets = [0, 0], sizes = [6, 32], strides = [1, 1]} : vector<6x128xf32> to vector<6x32xf32>
    %35 = arith.truncf %32 : vector<8x6xf32> to vector<8x6xbf16>
    %36 = arith.truncf %34 : vector<6x32xf32> to vector<6x32xbf16>
    %cst_15 = arith.constant dense<0.000000e+00> : vector<8x32xf32>
    %37 = tpu.matmul %35, %36, %cst_15 {dimension_numbers = #tpu.dot_dimension_numbers<[1], [0], [0], [1], [0, 0, 1, 1], [], []>} : vector<8x6xbf16>, vector<6x32xbf16>, vector<8x32xf32> -> vector<8x32xf32>
    %c536 = arith.constant 536 : index
    %c0_16 = arith.constant 0 : index
    %38 = vector.load %arg5[%c536, %c0_16] : memref<600x128xf32, #tpu.memory_space<vmem>>, vector<1x128xf32>
    %39 = vector.extract_strided_slice %38 {offsets = [0, 0], sizes = [1, 32], strides = [1, 1]} : vector<1x128xf32> to vector<1x32xf32>
    %40 = vector.broadcast %39 : vector<1x32xf32> to vector<8x32xf32>
    %41 = arith.addf %37, %40 : vector<8x32xf32>
    %cst_17 = arith.constant 0.000000e+00 : f32
    %42 = vector.broadcast %cst_17 : f32 to vector<8x32xf32>
    %43 = arith.maximumf %41, %42 : vector<8x32xf32>
    %c0_18 = arith.constant 0 : index
    %c0_19 = arith.constant 0 : index
    %c0_20 = arith.constant 0 : index
    %44 = vector.load %arg3[%c0_18, %c0_19, %c0_20] : memref<8x8x8xf32, #tpu.memory_space<vmem>>, vector<8x8x8xf32>
    %45 = vector.shape_cast %44 : vector<8x8x8xf32> to vector<64x8xf32>
    %c544 = arith.constant 544 : index
    %c0_21 = arith.constant 0 : index
    %46 = vector.load %arg5[%c544, %c0_21] : memref<600x128xf32, #tpu.memory_space<vmem>>, vector<8x128xf32>
    %47 = vector.extract_strided_slice %46 {offsets = [0, 0], sizes = [8, 96], strides = [1, 1]} : vector<8x128xf32> to vector<8x96xf32>
    %48 = arith.truncf %45 : vector<64x8xf32> to vector<64x8xbf16>
    %49 = arith.truncf %47 : vector<8x96xf32> to vector<8x96xbf16>
    %cst_22 = arith.constant dense<0.000000e+00> : vector<64x96xf32>
    %50 = tpu.matmul %48, %49, %cst_22 {dimension_numbers = #tpu.dot_dimension_numbers<[1], [0], [0], [1], [0, 0, 1, 1], [], []>} : vector<64x8xbf16>, vector<8x96xbf16>, vector<64x96xf32> -> vector<64x96xf32>
    %c552 = arith.constant 552 : index
    %c0_23 = arith.constant 0 : index
    %51 = vector.load %arg5[%c552, %c0_23] : memref<600x128xf32, #tpu.memory_space<vmem>>, vector<1x128xf32>
    %52 = vector.extract_strided_slice %51 {offsets = [0, 0], sizes = [1, 96], strides = [1, 1]} : vector<1x128xf32> to vector<1x96xf32>
    %53 = vector.broadcast %52 : vector<1x96xf32> to vector<64x96xf32>
    %54 = arith.addf %50, %53 : vector<64x96xf32>
    %c560 = arith.constant 560 : index
    %c0_24 = arith.constant 0 : index
    %55 = vector.load %arg5[%c560, %c0_24] : memref<600x128xf32, #tpu.memory_space<vmem>>, vector<32x128xf32>
    %56 = vector.extract_strided_slice %55 {offsets = [0, 0], sizes = [32, 96], strides = [1, 1]} : vector<32x128xf32> to vector<32x96xf32>
    %57 = arith.truncf %56 : vector<32x96xf32> to vector<32x96xbf16>
    %c592 = arith.constant 592 : index
    %c0_25 = arith.constant 0 : index
    %58 = vector.load %arg5[%c592, %c0_25] : memref<600x128xf32, #tpu.memory_space<vmem>>, vector<1x128xf32>
    %59 = vector.extract_strided_slice %58 {offsets = [0, 0], sizes = [1, 32], strides = [1, 1]} : vector<1x128xf32> to vector<1x32xf32>
    %60 = vector.extract_strided_slice %54 {offsets = [0, 0], sizes = [8, 96], strides = [1, 1]} : vector<64x96xf32> to vector<8x96xf32>
    %61 = arith.truncf %43 : vector<8x32xf32> to vector<8x32xbf16>
    %cst_26 = arith.constant dense<0.000000e+00> : vector<8x96xf32>
    %62 = tpu.matmul %61, %57, %cst_26 {dimension_numbers = #tpu.dot_dimension_numbers<[1], [0], [0], [1], [0, 0, 1, 1], [], []>} : vector<8x32xbf16>, vector<32x96xbf16>, vector<8x96xf32> -> vector<8x96xf32>
    %63 = vector.extract_strided_slice %60 {offsets = [0, 0], sizes = [8, 64], strides = [1, 1]} : vector<8x96xf32> to vector<8x64xf32>
    %64 = vector.extract_strided_slice %62 {offsets = [0, 0], sizes = [8, 64], strides = [1, 1]} : vector<8x96xf32> to vector<8x64xf32>
    %65 = arith.addf %63, %64 : vector<8x64xf32>
    %66 = arith.negf %65 : vector<8x64xf32>
    %67 = math.exp %66 : vector<8x64xf32>
    %cst_27 = arith.constant 1.000000e+00 : f32
    %68 = vector.broadcast %cst_27 : f32 to vector<8x64xf32>
    %69 = arith.addf %68, %67 : vector<8x64xf32>
    %70 = arith.divf %68, %69 : vector<8x64xf32>
    %71 = vector.extract_strided_slice %70 {offsets = [0, 0], sizes = [8, 32], strides = [1, 1]} : vector<8x64xf32> to vector<8x32xf32>
    %72 = vector.extract_strided_slice %70 {offsets = [0, 32], sizes = [8, 32], strides = [1, 1]} : vector<8x64xf32> to vector<8x32xf32>
    %73 = vector.extract_strided_slice %60 {offsets = [0, 64], sizes = [8, 32], strides = [1, 1]} : vector<8x96xf32> to vector<8x32xf32>
    %74 = vector.extract_strided_slice %62 {offsets = [0, 64], sizes = [8, 32], strides = [1, 1]} : vector<8x96xf32> to vector<8x32xf32>
    %75 = vector.broadcast %59 : vector<1x32xf32> to vector<8x32xf32>
    %76 = arith.addf %74, %75 : vector<8x32xf32>
    %77 = arith.mulf %71, %76 : vector<8x32xf32>
    %78 = arith.addf %73, %77 : vector<8x32xf32>
    %79 = math.tanh %78 : vector<8x32xf32>
    %cst_28 = arith.constant 1.000000e+00 : f32
    %80 = vector.broadcast %cst_28 : f32 to vector<8x32xf32>
    %81 = arith.subf %80, %72 : vector<8x32xf32>
    %82 = arith.mulf %81, %79 : vector<8x32xf32>
    %83 = arith.mulf %72, %43 : vector<8x32xf32>
    %84 = arith.addf %82, %83 : vector<8x32xf32>
    %85 = vector.extract_strided_slice %54 {offsets = [8, 0], sizes = [8, 96], strides = [1, 1]} : vector<64x96xf32> to vector<8x96xf32>
    %86 = arith.truncf %84 : vector<8x32xf32> to vector<8x32xbf16>
    %cst_29 = arith.constant dense<0.000000e+00> : vector<8x96xf32>
    %87 = tpu.matmul %86, %57, %cst_29 {dimension_numbers = #tpu.dot_dimension_numbers<[1], [0], [0], [1], [0, 0, 1, 1], [], []>} : vector<8x32xbf16>, vector<32x96xbf16>, vector<8x96xf32> -> vector<8x96xf32>
    %88 = vector.extract_strided_slice %85 {offsets = [0, 0], sizes = [8, 64], strides = [1, 1]} : vector<8x96xf32> to vector<8x64xf32>
    %89 = vector.extract_strided_slice %87 {offsets = [0, 0], sizes = [8, 64], strides = [1, 1]} : vector<8x96xf32> to vector<8x64xf32>
    %90 = arith.addf %88, %89 : vector<8x64xf32>
    %91 = arith.negf %90 : vector<8x64xf32>
    %92 = math.exp %91 : vector<8x64xf32>
    %cst_30 = arith.constant 1.000000e+00 : f32
    %93 = vector.broadcast %cst_30 : f32 to vector<8x64xf32>
    %94 = arith.addf %93, %92 : vector<8x64xf32>
    %95 = arith.divf %93, %94 : vector<8x64xf32>
    %96 = vector.extract_strided_slice %95 {offsets = [0, 0], sizes = [8, 32], strides = [1, 1]} : vector<8x64xf32> to vector<8x32xf32>
    %97 = vector.extract_strided_slice %95 {offsets = [0, 32], sizes = [8, 32], strides = [1, 1]} : vector<8x64xf32> to vector<8x32xf32>
    %98 = vector.extract_strided_slice %85 {offsets = [0, 64], sizes = [8, 32], strides = [1, 1]} : vector<8x96xf32> to vector<8x32xf32>
    %99 = vector.extract_strided_slice %87 {offsets = [0, 64], sizes = [8, 32], strides = [1, 1]} : vector<8x96xf32> to vector<8x32xf32>
    %100 = vector.broadcast %59 : vector<1x32xf32> to vector<8x32xf32>
    %101 = arith.addf %99, %100 : vector<8x32xf32>
    %102 = arith.mulf %96, %101 : vector<8x32xf32>
    %103 = arith.addf %98, %102 : vector<8x32xf32>
    %104 = math.tanh %103 : vector<8x32xf32>
    %cst_31 = arith.constant 1.000000e+00 : f32
    %105 = vector.broadcast %cst_31 : f32 to vector<8x32xf32>
    %106 = arith.subf %105, %97 : vector<8x32xf32>
    %107 = arith.mulf %106, %104 : vector<8x32xf32>
    %108 = arith.mulf %97, %84 : vector<8x32xf32>
    %109 = arith.addf %107, %108 : vector<8x32xf32>
    %110 = vector.extract_strided_slice %54 {offsets = [16, 0], sizes = [8, 96], strides = [1, 1]} : vector<64x96xf32> to vector<8x96xf32>
    %111 = arith.truncf %109 : vector<8x32xf32> to vector<8x32xbf16>
    %cst_32 = arith.constant dense<0.000000e+00> : vector<8x96xf32>
    %112 = tpu.matmul %111, %57, %cst_32 {dimension_numbers = #tpu.dot_dimension_numbers<[1], [0], [0], [1], [0, 0, 1, 1], [], []>} : vector<8x32xbf16>, vector<32x96xbf16>, vector<8x96xf32> -> vector<8x96xf32>
    %113 = vector.extract_strided_slice %110 {offsets = [0, 0], sizes = [8, 64], strides = [1, 1]} : vector<8x96xf32> to vector<8x64xf32>
    %114 = vector.extract_strided_slice %112 {offsets = [0, 0], sizes = [8, 64], strides = [1, 1]} : vector<8x96xf32> to vector<8x64xf32>
    %115 = arith.addf %113, %114 : vector<8x64xf32>
    %116 = arith.negf %115 : vector<8x64xf32>
    %117 = math.exp %116 : vector<8x64xf32>
    %cst_33 = arith.constant 1.000000e+00 : f32
    %118 = vector.broadcast %cst_33 : f32 to vector<8x64xf32>
    %119 = arith.addf %118, %117 : vector<8x64xf32>
    %120 = arith.divf %118, %119 : vector<8x64xf32>
    %121 = vector.extract_strided_slice %120 {offsets = [0, 0], sizes = [8, 32], strides = [1, 1]} : vector<8x64xf32> to vector<8x32xf32>
    %122 = vector.extract_strided_slice %120 {offsets = [0, 32], sizes = [8, 32], strides = [1, 1]} : vector<8x64xf32> to vector<8x32xf32>
    %123 = vector.extract_strided_slice %110 {offsets = [0, 64], sizes = [8, 32], strides = [1, 1]} : vector<8x96xf32> to vector<8x32xf32>
    %124 = vector.extract_strided_slice %112 {offsets = [0, 64], sizes = [8, 32], strides = [1, 1]} : vector<8x96xf32> to vector<8x32xf32>
    %125 = vector.broadcast %59 : vector<1x32xf32> to vector<8x32xf32>
    %126 = arith.addf %124, %125 : vector<8x32xf32>
    %127 = arith.mulf %121, %126 : vector<8x32xf32>
    %128 = arith.addf %123, %127 : vector<8x32xf32>
    %129 = math.tanh %128 : vector<8x32xf32>
    %cst_34 = arith.constant 1.000000e+00 : f32
    %130 = vector.broadcast %cst_34 : f32 to vector<8x32xf32>
    %131 = arith.subf %130, %122 : vector<8x32xf32>
    %132 = arith.mulf %131, %129 : vector<8x32xf32>
    %133 = arith.mulf %122, %109 : vector<8x32xf32>
    %134 = arith.addf %132, %133 : vector<8x32xf32>
    %135 = vector.extract_strided_slice %54 {offsets = [24, 0], sizes = [8, 96], strides = [1, 1]} : vector<64x96xf32> to vector<8x96xf32>
    %136 = arith.truncf %134 : vector<8x32xf32> to vector<8x32xbf16>
    %cst_35 = arith.constant dense<0.000000e+00> : vector<8x96xf32>
    %137 = tpu.matmul %136, %57, %cst_35 {dimension_numbers = #tpu.dot_dimension_numbers<[1], [0], [0], [1], [0, 0, 1, 1], [], []>} : vector<8x32xbf16>, vector<32x96xbf16>, vector<8x96xf32> -> vector<8x96xf32>
    %138 = vector.extract_strided_slice %135 {offsets = [0, 0], sizes = [8, 64], strides = [1, 1]} : vector<8x96xf32> to vector<8x64xf32>
    %139 = vector.extract_strided_slice %137 {offsets = [0, 0], sizes = [8, 64], strides = [1, 1]} : vector<8x96xf32> to vector<8x64xf32>
    %140 = arith.addf %138, %139 : vector<8x64xf32>
    %141 = arith.negf %140 : vector<8x64xf32>
    %142 = math.exp %141 : vector<8x64xf32>
    %cst_36 = arith.constant 1.000000e+00 : f32
    %143 = vector.broadcast %cst_36 : f32 to vector<8x64xf32>
    %144 = arith.addf %143, %142 : vector<8x64xf32>
    %145 = arith.divf %143, %144 : vector<8x64xf32>
    %146 = vector.extract_strided_slice %145 {offsets = [0, 0], sizes = [8, 32], strides = [1, 1]} : vector<8x64xf32> to vector<8x32xf32>
    %147 = vector.extract_strided_slice %145 {offsets = [0, 32], sizes = [8, 32], strides = [1, 1]} : vector<8x64xf32> to vector<8x32xf32>
    %148 = vector.extract_strided_slice %135 {offsets = [0, 64], sizes = [8, 32], strides = [1, 1]} : vector<8x96xf32> to vector<8x32xf32>
    %149 = vector.extract_strided_slice %137 {offsets = [0, 64], sizes = [8, 32], strides = [1, 1]} : vector<8x96xf32> to vector<8x32xf32>
    %150 = vector.broadcast %59 : vector<1x32xf32> to vector<8x32xf32>
    %151 = arith.addf %149, %150 : vector<8x32xf32>
    %152 = arith.mulf %146, %151 : vector<8x32xf32>
    %153 = arith.addf %148, %152 : vector<8x32xf32>
    %154 = math.tanh %153 : vector<8x32xf32>
    %cst_37 = arith.constant 1.000000e+00 : f32
    %155 = vector.broadcast %cst_37 : f32 to vector<8x32xf32>
    %156 = arith.subf %155, %147 : vector<8x32xf32>
    %157 = arith.mulf %156, %154 : vector<8x32xf32>
    %158 = arith.mulf %147, %134 : vector<8x32xf32>
    %159 = arith.addf %157, %158 : vector<8x32xf32>
    %160 = vector.extract_strided_slice %54 {offsets = [32, 0], sizes = [8, 96], strides = [1, 1]} : vector<64x96xf32> to vector<8x96xf32>
    %161 = arith.truncf %159 : vector<8x32xf32> to vector<8x32xbf16>
    %cst_38 = arith.constant dense<0.000000e+00> : vector<8x96xf32>
    %162 = tpu.matmul %161, %57, %cst_38 {dimension_numbers = #tpu.dot_dimension_numbers<[1], [0], [0], [1], [0, 0, 1, 1], [], []>} : vector<8x32xbf16>, vector<32x96xbf16>, vector<8x96xf32> -> vector<8x96xf32>
    %163 = vector.extract_strided_slice %160 {offsets = [0, 0], sizes = [8, 64], strides = [1, 1]} : vector<8x96xf32> to vector<8x64xf32>
    %164 = vector.extract_strided_slice %162 {offsets = [0, 0], sizes = [8, 64], strides = [1, 1]} : vector<8x96xf32> to vector<8x64xf32>
    %165 = arith.addf %163, %164 : vector<8x64xf32>
    %166 = arith.negf %165 : vector<8x64xf32>
    %167 = math.exp %166 : vector<8x64xf32>
    %cst_39 = arith.constant 1.000000e+00 : f32
    %168 = vector.broadcast %cst_39 : f32 to vector<8x64xf32>
    %169 = arith.addf %168, %167 : vector<8x64xf32>
    %170 = arith.divf %168, %169 : vector<8x64xf32>
    %171 = vector.extract_strided_slice %170 {offsets = [0, 0], sizes = [8, 32], strides = [1, 1]} : vector<8x64xf32> to vector<8x32xf32>
    %172 = vector.extract_strided_slice %170 {offsets = [0, 32], sizes = [8, 32], strides = [1, 1]} : vector<8x64xf32> to vector<8x32xf32>
    %173 = vector.extract_strided_slice %160 {offsets = [0, 64], sizes = [8, 32], strides = [1, 1]} : vector<8x96xf32> to vector<8x32xf32>
    %174 = vector.extract_strided_slice %162 {offsets = [0, 64], sizes = [8, 32], strides = [1, 1]} : vector<8x96xf32> to vector<8x32xf32>
    %175 = vector.broadcast %59 : vector<1x32xf32> to vector<8x32xf32>
    %176 = arith.addf %174, %175 : vector<8x32xf32>
    %177 = arith.mulf %171, %176 : vector<8x32xf32>
    %178 = arith.addf %173, %177 : vector<8x32xf32>
    %179 = math.tanh %178 : vector<8x32xf32>
    %cst_40 = arith.constant 1.000000e+00 : f32
    %180 = vector.broadcast %cst_40 : f32 to vector<8x32xf32>
    %181 = arith.subf %180, %172 : vector<8x32xf32>
    %182 = arith.mulf %181, %179 : vector<8x32xf32>
    %183 = arith.mulf %172, %159 : vector<8x32xf32>
    %184 = arith.addf %182, %183 : vector<8x32xf32>
    %185 = vector.extract_strided_slice %54 {offsets = [40, 0], sizes = [8, 96], strides = [1, 1]} : vector<64x96xf32> to vector<8x96xf32>
    %186 = arith.truncf %184 : vector<8x32xf32> to vector<8x32xbf16>
    %cst_41 = arith.constant dense<0.000000e+00> : vector<8x96xf32>
    %187 = tpu.matmul %186, %57, %cst_41 {dimension_numbers = #tpu.dot_dimension_numbers<[1], [0], [0], [1], [0, 0, 1, 1], [], []>} : vector<8x32xbf16>, vector<32x96xbf16>, vector<8x96xf32> -> vector<8x96xf32>
    %188 = vector.extract_strided_slice %185 {offsets = [0, 0], sizes = [8, 64], strides = [1, 1]} : vector<8x96xf32> to vector<8x64xf32>
    %189 = vector.extract_strided_slice %187 {offsets = [0, 0], sizes = [8, 64], strides = [1, 1]} : vector<8x96xf32> to vector<8x64xf32>
    %190 = arith.addf %188, %189 : vector<8x64xf32>
    %191 = arith.negf %190 : vector<8x64xf32>
    %192 = math.exp %191 : vector<8x64xf32>
    %cst_42 = arith.constant 1.000000e+00 : f32
    %193 = vector.broadcast %cst_42 : f32 to vector<8x64xf32>
    %194 = arith.addf %193, %192 : vector<8x64xf32>
    %195 = arith.divf %193, %194 : vector<8x64xf32>
    %196 = vector.extract_strided_slice %195 {offsets = [0, 0], sizes = [8, 32], strides = [1, 1]} : vector<8x64xf32> to vector<8x32xf32>
    %197 = vector.extract_strided_slice %195 {offsets = [0, 32], sizes = [8, 32], strides = [1, 1]} : vector<8x64xf32> to vector<8x32xf32>
    %198 = vector.extract_strided_slice %185 {offsets = [0, 64], sizes = [8, 32], strides = [1, 1]} : vector<8x96xf32> to vector<8x32xf32>
    %199 = vector.extract_strided_slice %187 {offsets = [0, 64], sizes = [8, 32], strides = [1, 1]} : vector<8x96xf32> to vector<8x32xf32>
    %200 = vector.broadcast %59 : vector<1x32xf32> to vector<8x32xf32>
    %201 = arith.addf %199, %200 : vector<8x32xf32>
    %202 = arith.mulf %196, %201 : vector<8x32xf32>
    %203 = arith.addf %198, %202 : vector<8x32xf32>
    %204 = math.tanh %203 : vector<8x32xf32>
    %cst_43 = arith.constant 1.000000e+00 : f32
    %205 = vector.broadcast %cst_43 : f32 to vector<8x32xf32>
    %206 = arith.subf %205, %197 : vector<8x32xf32>
    %207 = arith.mulf %206, %204 : vector<8x32xf32>
    %208 = arith.mulf %197, %184 : vector<8x32xf32>
    %209 = arith.addf %207, %208 : vector<8x32xf32>
    %210 = vector.extract_strided_slice %54 {offsets = [48, 0], sizes = [8, 96], strides = [1, 1]} : vector<64x96xf32> to vector<8x96xf32>
    %211 = arith.truncf %209 : vector<8x32xf32> to vector<8x32xbf16>
    %cst_44 = arith.constant dense<0.000000e+00> : vector<8x96xf32>
    %212 = tpu.matmul %211, %57, %cst_44 {dimension_numbers = #tpu.dot_dimension_numbers<[1], [0], [0], [1], [0, 0, 1, 1], [], []>} : vector<8x32xbf16>, vector<32x96xbf16>, vector<8x96xf32> -> vector<8x96xf32>
    %213 = vector.extract_strided_slice %210 {offsets = [0, 0], sizes = [8, 64], strides = [1, 1]} : vector<8x96xf32> to vector<8x64xf32>
    %214 = vector.extract_strided_slice %212 {offsets = [0, 0], sizes = [8, 64], strides = [1, 1]} : vector<8x96xf32> to vector<8x64xf32>
    %215 = arith.addf %213, %214 : vector<8x64xf32>
    %216 = arith.negf %215 : vector<8x64xf32>
    %217 = math.exp %216 : vector<8x64xf32>
    %cst_45 = arith.constant 1.000000e+00 : f32
    %218 = vector.broadcast %cst_45 : f32 to vector<8x64xf32>
    %219 = arith.addf %218, %217 : vector<8x64xf32>
    %220 = arith.divf %218, %219 : vector<8x64xf32>
    %221 = vector.extract_strided_slice %220 {offsets = [0, 0], sizes = [8, 32], strides = [1, 1]} : vector<8x64xf32> to vector<8x32xf32>
    %222 = vector.extract_strided_slice %220 {offsets = [0, 32], sizes = [8, 32], strides = [1, 1]} : vector<8x64xf32> to vector<8x32xf32>
    %223 = vector.extract_strided_slice %210 {offsets = [0, 64], sizes = [8, 32], strides = [1, 1]} : vector<8x96xf32> to vector<8x32xf32>
    %224 = vector.extract_strided_slice %212 {offsets = [0, 64], sizes = [8, 32], strides = [1, 1]} : vector<8x96xf32> to vector<8x32xf32>
    %225 = vector.broadcast %59 : vector<1x32xf32> to vector<8x32xf32>
    %226 = arith.addf %224, %225 : vector<8x32xf32>
    %227 = arith.mulf %221, %226 : vector<8x32xf32>
    %228 = arith.addf %223, %227 : vector<8x32xf32>
    %229 = math.tanh %228 : vector<8x32xf32>
    %cst_46 = arith.constant 1.000000e+00 : f32
    %230 = vector.broadcast %cst_46 : f32 to vector<8x32xf32>
    %231 = arith.subf %230, %222 : vector<8x32xf32>
    %232 = arith.mulf %231, %229 : vector<8x32xf32>
    %233 = arith.mulf %222, %209 : vector<8x32xf32>
    %234 = arith.addf %232, %233 : vector<8x32xf32>
    %235 = vector.extract_strided_slice %54 {offsets = [56, 0], sizes = [8, 96], strides = [1, 1]} : vector<64x96xf32> to vector<8x96xf32>
    %236 = arith.truncf %234 : vector<8x32xf32> to vector<8x32xbf16>
    %cst_47 = arith.constant dense<0.000000e+00> : vector<8x96xf32>
    %237 = tpu.matmul %236, %57, %cst_47 {dimension_numbers = #tpu.dot_dimension_numbers<[1], [0], [0], [1], [0, 0, 1, 1], [], []>} : vector<8x32xbf16>, vector<32x96xbf16>, vector<8x96xf32> -> vector<8x96xf32>
    %238 = vector.extract_strided_slice %235 {offsets = [0, 0], sizes = [8, 64], strides = [1, 1]} : vector<8x96xf32> to vector<8x64xf32>
    %239 = vector.extract_strided_slice %237 {offsets = [0, 0], sizes = [8, 64], strides = [1, 1]} : vector<8x96xf32> to vector<8x64xf32>
    %240 = arith.addf %238, %239 : vector<8x64xf32>
    %241 = arith.negf %240 : vector<8x64xf32>
    %242 = math.exp %241 : vector<8x64xf32>
    %cst_48 = arith.constant 1.000000e+00 : f32
    %243 = vector.broadcast %cst_48 : f32 to vector<8x64xf32>
    %244 = arith.addf %243, %242 : vector<8x64xf32>
    %245 = arith.divf %243, %244 : vector<8x64xf32>
    %246 = vector.extract_strided_slice %245 {offsets = [0, 0], sizes = [8, 32], strides = [1, 1]} : vector<8x64xf32> to vector<8x32xf32>
    %247 = vector.extract_strided_slice %245 {offsets = [0, 32], sizes = [8, 32], strides = [1, 1]} : vector<8x64xf32> to vector<8x32xf32>
    %248 = vector.extract_strided_slice %235 {offsets = [0, 64], sizes = [8, 32], strides = [1, 1]} : vector<8x96xf32> to vector<8x32xf32>
    %249 = vector.extract_strided_slice %237 {offsets = [0, 64], sizes = [8, 32], strides = [1, 1]} : vector<8x96xf32> to vector<8x32xf32>
    %250 = vector.broadcast %59 : vector<1x32xf32> to vector<8x32xf32>
    %251 = arith.addf %249, %250 : vector<8x32xf32>
    %252 = arith.mulf %246, %251 : vector<8x32xf32>
    %253 = arith.addf %248, %252 : vector<8x32xf32>
    %254 = math.tanh %253 : vector<8x32xf32>
    %cst_49 = arith.constant 1.000000e+00 : f32
    %255 = vector.broadcast %cst_49 : f32 to vector<8x32xf32>
    %256 = arith.subf %255, %247 : vector<8x32xf32>
    %257 = arith.mulf %256, %254 : vector<8x32xf32>
    %258 = arith.mulf %247, %234 : vector<8x32xf32>
    %259 = arith.addf %257, %258 : vector<8x32xf32>
    %c248 = arith.constant 248 : index
    %c0_50 = arith.constant 0 : index
    %260 = vector.load %arg5[%c248, %c0_50] : memref<600x128xf32, #tpu.memory_space<vmem>>, vector<32x128xf32>
    %261 = arith.truncf %0 : vector<8x32xf32> to vector<8x32xbf16>
    %262 = arith.truncf %260 : vector<32x128xf32> to vector<32x128xbf16>
    %cst_51 = arith.constant dense<0.000000e+00> : vector<8x128xf32>
    %263 = tpu.matmul %261, %262, %cst_51 {dimension_numbers = #tpu.dot_dimension_numbers<[1], [0], [0], [1], [0, 0, 1, 1], [], []>} : vector<8x32xbf16>, vector<32x128xbf16>, vector<8x128xf32> -> vector<8x128xf32>
    %c280 = arith.constant 280 : index
    %c0_52 = arith.constant 0 : index
    %264 = vector.load %arg5[%c280, %c0_52] : memref<600x128xf32, #tpu.memory_space<vmem>>, vector<32x128xf32>
    %265 = arith.truncf %259 : vector<8x32xf32> to vector<8x32xbf16>
    %266 = arith.truncf %264 : vector<32x128xf32> to vector<32x128xbf16>
    %cst_53 = arith.constant dense<0.000000e+00> : vector<8x128xf32>
    %267 = tpu.matmul %265, %266, %cst_53 {dimension_numbers = #tpu.dot_dimension_numbers<[1], [0], [0], [1], [0, 0, 1, 1], [], []>} : vector<8x32xbf16>, vector<32x128xbf16>, vector<8x128xf32> -> vector<8x128xf32>
    %268 = arith.addf %263, %267 : vector<8x128xf32>
    %c312 = arith.constant 312 : index
    %c0_54 = arith.constant 0 : index
    %269 = vector.load %arg5[%c312, %c0_54] : memref<600x128xf32, #tpu.memory_space<vmem>>, vector<1x128xf32>
    %270 = vector.broadcast %269 : vector<1x128xf32> to vector<8x128xf32>
    %271 = arith.addf %268, %270 : vector<8x128xf32>
    %cst_55 = arith.constant 0.000000e+00 : f32
    %272 = vector.broadcast %cst_55 : f32 to vector<8x128xf32>
    %273 = arith.maximumf %271, %272 : vector<8x128xf32>
    %c320 = arith.constant 320 : index
    %c0_56 = arith.constant 0 : index
    %274 = vector.load %arg5[%c320, %c0_56] : memref<600x128xf32, #tpu.memory_space<vmem>>, vector<128x128xf32>
    %275 = vector.extract_strided_slice %274 {offsets = [0, 0], sizes = [128, 64], strides = [1, 1]} : vector<128x128xf32> to vector<128x64xf32>
    %276 = arith.truncf %273 : vector<8x128xf32> to vector<8x128xbf16>
    %277 = arith.truncf %275 : vector<128x64xf32> to vector<128x64xbf16>
    %cst_57 = arith.constant dense<0.000000e+00> : vector<8x64xf32>
    %278 = tpu.matmul %276, %277, %cst_57 {dimension_numbers = #tpu.dot_dimension_numbers<[1], [0], [0], [1], [0, 0, 1, 1], [], []>} : vector<8x128xbf16>, vector<128x64xbf16>, vector<8x64xf32> -> vector<8x64xf32>
    %c448 = arith.constant 448 : index
    %c0_58 = arith.constant 0 : index
    %279 = vector.load %arg5[%c448, %c0_58] : memref<600x128xf32, #tpu.memory_space<vmem>>, vector<1x128xf32>
    %280 = vector.extract_strided_slice %279 {offsets = [0, 0], sizes = [1, 64], strides = [1, 1]} : vector<1x128xf32> to vector<1x64xf32>
    %281 = vector.broadcast %280 : vector<1x64xf32> to vector<8x64xf32>
    %282 = arith.addf %278, %281 : vector<8x64xf32>
    %cst_59 = arith.constant 0.000000e+00 : f32
    %283 = vector.broadcast %cst_59 : f32 to vector<8x64xf32>
    %284 = arith.maximumf %282, %283 : vector<8x64xf32>
    %c456 = arith.constant 456 : index
    %c0_60 = arith.constant 0 : index
    %285 = vector.load %arg5[%c456, %c0_60] : memref<600x128xf32, #tpu.memory_space<vmem>>, vector<64x128xf32>
    %286 = vector.extract_strided_slice %285 {offsets = [0, 0], sizes = [64, 16], strides = [1, 1]} : vector<64x128xf32> to vector<64x16xf32>
    %287 = arith.truncf %284 : vector<8x64xf32> to vector<8x64xbf16>
    %288 = arith.truncf %286 : vector<64x16xf32> to vector<64x16xbf16>
    %cst_61 = arith.constant dense<0.000000e+00> : vector<8x16xf32>
    %289 = tpu.matmul %287, %288, %cst_61 {dimension_numbers = #tpu.dot_dimension_numbers<[1], [0], [0], [1], [0, 0, 1, 1], [], []>} : vector<8x64xbf16>, vector<64x16xbf16>, vector<8x16xf32> -> vector<8x16xf32>
    %c520 = arith.constant 520 : index
    %c0_62 = arith.constant 0 : index
    %290 = vector.load %arg5[%c520, %c0_62] : memref<600x128xf32, #tpu.memory_space<vmem>>, vector<1x128xf32>
    %291 = vector.extract_strided_slice %290 {offsets = [0, 0], sizes = [1, 16], strides = [1, 1]} : vector<1x128xf32> to vector<1x16xf32>
    %292 = vector.broadcast %291 : vector<1x16xf32> to vector<8x16xf32>
    %293 = arith.addf %289, %292 : vector<8x16xf32>
    %294 = vector.extract_strided_slice %293 {offsets = [0, 0], sizes = [8, 8], strides = [1, 1]} : vector<8x16xf32> to vector<8x8xf32>
    %295 = vector.extract_strided_slice %293 {offsets = [0, 8], sizes = [8, 8], strides = [1, 1]} : vector<8x16xf32> to vector<8x8xf32>
    %296 = arith.subf %295, %31 : vector<8x8xf32>
    %297 = math.exp %296 : vector<8x8xf32>
    %298 = arith.subf %30, %294 : vector<8x8xf32>
    %299 = arith.mulf %298, %298 : vector<8x8xf32>
    %cst_63 = arith.constant 0.000000e+00 : f32
    %300 = vector.broadcast %cst_63 : f32 to vector<8x8xf32>
    %301 = arith.subf %300, %31 : vector<8x8xf32>
    %302 = math.exp %301 : vector<8x8xf32>
    %303 = arith.mulf %299, %302 : vector<8x8xf32>
    %304 = arith.addf %297, %303 : vector<8x8xf32>
    %cst_64 = arith.constant 1.000000e+00 : f32
    %305 = vector.broadcast %cst_64 : f32 to vector<8x8xf32>
    %306 = arith.subf %304, %305 : vector<8x8xf32>
    %307 = arith.subf %31, %295 : vector<8x8xf32>
    %308 = arith.addf %306, %307 : vector<8x8xf32>
    %cst_65 = arith.constant 5.000000e-01 : f32
    %309 = vector.broadcast %cst_65 : f32 to vector<8x8xf32>
    %310 = arith.mulf %309, %308 : vector<8x8xf32>
    %cst_66 = arith.constant dense<0.000000e+00> : vector<8xf32>
    %311 = vector.multi_reduction <add>, %310, %cst_66 [1] : vector<8x8xf32> to vector<8xf32>
    %312 = vector.shape_cast %311 : vector<8xf32> to vector<8x1xf32>
    %c0_67 = arith.constant 0 : index
    %c0_68 = arith.constant 0 : index
    %313 = vector.load %arg7[%c0_67, %c0_68] : memref<8x1xf32, #tpu.memory_space<vmem>>, vector<8x1xf32>
    tpu.vector_store %arg7[%c0_67, %c0_68], %312 {strides = array<i32>} : memref<8x1xf32, #tpu.memory_space<vmem>>, vector<8x1xf32>,
    %cst_69 = arith.constant 5.000000e-01 : f32
    %314 = vector.broadcast %cst_69 : f32 to vector<8x8xf32>
    %315 = arith.mulf %314, %295 : vector<8x8xf32>
    %316 = math.exp %315 : vector<8x8xf32>
    %317 = vector.shape_cast %294 : vector<8x8xf32> to vector<8x1x8xf32>
    %c0_70 = arith.constant 0 : index
    %c0_71 = arith.constant 0 : index
    %c0_72 = arith.constant 0 : index
    %318 = vector.load %arg4[%c0_70, %c0_71, %c0_72] : memref<8x8x8xf32, #tpu.memory_space<vmem>>, vector<8x8x8xf32>
    %319 = vector.shape_cast %316 : vector<8x8xf32> to vector<8x1x8xf32>
    %320 = vector.broadcast %319 : vector<8x1x8xf32> to vector<8x8x8xf32>
    %321 = arith.mulf %318, %320 : vector<8x8x8xf32>
    %322 = vector.broadcast %317 : vector<8x1x8xf32> to vector<8x8x8xf32>
    %323 = arith.addf %322, %321 : vector<8x8x8xf32>
    %c0_73 = arith.constant 0 : index
    %c0_74 = arith.constant 0 : index
    %c0_75 = arith.constant 0 : index
    %324 = vector.load %arg6[%c0_73, %c0_74, %c0_75] : memref<8x8x8xf32, #tpu.memory_space<vmem>>, vector<8x8x8xf32>
    tpu.vector_store %arg6[%c0_73, %c0_74, %c0_75], %323 {strides = array<i32>} : memref<8x8x8xf32, #tpu.memory_space<vmem>>, vector<8x8x8xf32>,
    return
  }
  func.func @transform_0(%arg0: i32) -> (i32, i32) {
    %c0_i32 = arith.constant 0 : i32
    %c0_i32_0 = arith.constant 0 : i32
    return %arg0, %c0_i32 : i32, i32
  }
  func.func @transform_1(%arg0: i32) -> (i32, i32) {
    %c0_i32 = arith.constant 0 : i32
    %c0_i32_0 = arith.constant 0 : i32
    return %arg0, %c0_i32 : i32, i32
  }
  func.func @transform_2(%arg0: i32) -> (i32, i32, i32) {
    %c0_i32 = arith.constant 0 : i32
    %c0_i32_0 = arith.constant 0 : i32
    %c0_i32_1 = arith.constant 0 : i32
    return %c0_i32, %arg0, %c0_i32_0 : i32, i32, i32
  }
  func.func @transform_3(%arg0: i32) -> (i32, i32, i32) {
    %c0_i32 = arith.constant 0 : i32
    %c0_i32_0 = arith.constant 0 : i32
    %c0_i32_1 = arith.constant 0 : i32
    return %arg0, %c0_i32, %c0_i32_0 : i32, i32, i32
  }
  func.func @transform_4(%arg0: i32) -> (i32, i32) {
    %c0_i32 = arith.constant 0 : i32
    %c0_i32_0 = arith.constant 0 : i32
    %c0_i32_1 = arith.constant 0 : i32
    return %c0_i32, %c0_i32_0 : i32, i32
  }
  func.func @transform_5(%arg0: i32) -> (i32, i32, i32) {
    %c0_i32 = arith.constant 0 : i32
    %c0_i32_0 = arith.constant 0 : i32
    %c0_i32_1 = arith.constant 0 : i32
    return %arg0, %c0_i32, %c0_i32_0 : i32, i32, i32
  }
  func.func @transform_6(%arg0: i32) -> (i32, i32) {
    %c0_i32 = arith.constant 0 : i32
    %c0_i32_0 = arith.constant 0 : i32
    return %arg0, %c0_i32 : i32, i32
  }
}

</mosaic_0001>

<llo_original>
// kernel: bitrap_np_forward.1
$region0: #{bitrap_np_forward.1}
  #allocation0 [shape = 'u32[]', space=smem, size = 0x4, offset = 0x4, fixed_abs, tag = 'smem constant byte address 0x4 - core index']
  #allocation1 [shape = 'u32[72,128]{1,0:T(1,128)}', space=vmem, size = 0x9000, scoped, tag = 'internal scratch']
  %s0 = inlined_call_operand.vmem [shape: f32[8,32], index: 0, kind: input, shape index: {}]
  %s1 = inlined_call_operand.vmem [shape: f32[8,6], index: 1, kind: input, shape index: {}]
  %s2 = inlined_call_operand.vmem [shape: f32[8,8,8], index: 2, kind: input, shape index: {}]
  %s3 = inlined_call_operand.vmem [shape: f32[8,8,8], index: 3, kind: input, shape index: {}]
  %s4 = inlined_call_operand.hbm [shape: f32[600,128], index: 4, kind: input, shape index: {}]
  %s5 = inlined_call_operand.vmem [shape: f32[8,8,8], index: 5, kind: output, shape index: {0}]
  %s6 = inlined_call_operand.vmem [shape: f32[8,1], index: 6, kind: output, shape index: {1}]
  %7 = xla_tuple %s5, %s6
  %s8 = sld [smem:[#allocation0]]
  $region42: #{bitrap_np_forward.1} parent=0
    _
  %s10 = ssub.s32 1, %s8
  %s11 = scalar_select 0, %s10, %s8
  $region1: #{bitrap_np_forward.1} parent=0
    #allocation2 [shape = 'u8[307200]{0}', space=vmem, size = 0x4b000, scoped, tag = 'input window, operand 4, single buffered']
    #allocation3 [shape = 's32[1]{0}', space=sflag, size = 0x4, scoped, tag = 'scoped memory for bitrap_np_forward.1']
    %12 = vsyncpa [#allocation3], 0
    // Predicated region
    $region2: #{bitrap_np_forward.1} parent=1 // pred_check
      _
    $region3: #{bitrap_np_forward.1} parent=1 // pred_check_branch
      %14 = sbr.rel (0) target = $region5
    $region4: #{bitrap_np_forward.1} parent=1 // pred_region
      _
    $region5: #{bitrap_np_forward.1} parent=1 // pred_fallthru
      _
    // Predicated region
    $region6: #{bitrap_np_forward.1} parent=1 // pred_check
      _
    $region7: #{bitrap_np_forward.1} parent=1 // pred_check_branch
      %16 = sbr.rel (0) target = $region9
    $region8: #{bitrap_np_forward.1} parent=1 // pred_region
      _
    $region9: #{bitrap_np_forward.1} parent=1 // pred_fallthru
      _
    // Predicated region
    $region10: #{bitrap_np_forward.1} parent=1 // pred_check
      _
    $region11: #{bitrap_np_forward.1} parent=1 // pred_check_branch
      %18 = sbr.rel (0) target = $region13
    $region12: #{bitrap_np_forward.1} parent=1 // pred_region
      _
    $region13: #{bitrap_np_forward.1} parent=1 // pred_fallthru
      _
    // Predicated region
    $region14: #{bitrap_np_forward.1} parent=1 // pred_check
      _
    $region15: #{bitrap_np_forward.1} parent=1 // pred_check_branch
      %20 = sbr.rel (0) target = $region17
    $region16: #{bitrap_np_forward.1} parent=1 // pred_region
      _
    $region17: #{bitrap_np_forward.1} parent=1 // pred_fallthru
      _
    // Predicated region
    $region18: #{bitrap_np_forward.1} parent=1 // pred_check
      _
    $region19: #{bitrap_np_forward.1} parent=1 // pred_check_branch
      %22 = sbr.rel (0) target = $region21
    $region20: #{bitrap_np_forward.1} parent=1 // pred_region
      %24 = vsyncadd [#allocation3], 0
      %s25 = sshll.u32 %s4, 4
      %s26 = int_to_ptr.hbm [resolvable:$true] %s25
      %s27 = sshll.u32 [#allocation2], 4
      %s28 = int_to_ptr.vmem [resolvable:$true] %s27
      %33 = dma.hbm_to_vmem [thread:$0]  %s26, 9600, %s28, [#allocation3], 128, 128, 8
    $region21: #{bitrap_np_forward.1} parent=1 // pred_fallthru
      _
    // Predicated region
    $region22: #{bitrap_np_forward.1} parent=1 // pred_check
      _
    $region23: #{bitrap_np_forward.1} parent=1 // pred_check_branch
      %35 = sbr.rel (0) target = $region25
    $region24: #{bitrap_np_forward.1} parent=1 // pred_region
      %37 = dma.done [#allocation3], 9600
    $region25: #{bitrap_np_forward.1} parent=1 // pred_fallthru
      _
    %v39 = vld [vmem:[%s0] sm:$0xff]
    %v40 = vld [vmem:[#allocation2] sm:$0xff]
    %v41 = vld [vmem:[#allocation2 + $0x8] sm:$0xff]
    %v42 = vld [vmem:[#allocation2 + $0x10] sm:$0xff]
    %v43 = vld [vmem:[#allocation2 + $0x18] sm:$0xff]
    %v44 = vpack.c.bf16 %v39, %v39
    %v45 = vpack.c.bf16 %v41, %v40
    %v46 = vpack.c.bf16 %v43, %v42
    %v47 = vld [vmem:[#allocation2 + $0x20] sm:$0x1]
    %v48 = vperm.slane %v47, 0
    %vm49 = vcmask 261120
    %v51 = vsel %vm49, %v44, 0
    %53 = vmatpush.bf16.msra.mxu0 0
    %54 = vmatpush.bf16.msra.mxu0 0
    %55 = vmatpush.bf16.msra.mxu0 0
    %56 = vmatpush.bf16.msra.mxu0 0
    %57 = vmatpush.bf16.msra.mxu0 0
    %58 = vmatpush.bf16.msra.mxu0 0
    %59 = vmatpush.bf16.msra.mxu0 %v46
    %60 = vmatpush.bf16.msra.mxu0 %v45
    %61 = vmatmul.bf16.gmra.mxu0 %v51
    %v62 = vpop.f32.mrf.mxu0
    %v63 = vadd.f32 %v48, %v62
    %v64 = vpop.f32.mrf.mxu0
    %65 = vdwg.mxu0
    %v66 = vmax.f32 %v63, 0.0
    %v67 = vld [vmem:[#allocation2 + $0x28] sm:$0xff]
    %v68 = vld [vmem:[#allocation2 + $0x30] sm:$0xff]
    %v69 = vld [vmem:[#allocation2 + $0x38] sm:$0xff]
    %v70 = vld [vmem:[#allocation2 + $0x40] sm:$0xff]
    %v71 = vld [vmem:[#allocation2 + $0x48] sm:$0xff]
    %v72 = vld [vmem:[#allocation2 + $0x50] sm:$0xff]
    %v73 = vld [vmem:[#allocation2 + $0x58] sm:$0xff]
    %v74 = vld [vmem:[#allocation2 + $0x60] sm:$0xff]
    %v75 = vld [vmem:[#allocation2 + $0x68] sm:$0xff]
    %v76 = vld [vmem:[#allocation2 + $0x70] sm:$0xff]
    %v77 = vld [vmem:[#allocation2 + $0x78] sm:$0xff]
    %v78 = vld [vmem:[#allocation2 + $0x80] sm:$0xff]
    %v79 = vld [vmem:[#allocation2 + $0x88] sm:$0xff]
    %v80 = vld [vmem:[#allocation2 + $0x90] sm:$0xff]
    %v81 = vld [vmem:[#allocation2 + $0x98] sm:$0xff]
    %v82 = vld [vmem:[#allocation2 + $0xa0] sm:$0xff]
    %v83 = vpack.c.bf16 %v66, %v66
    %v84 = vpack.c.bf16 %v68, %v67
    %v85 = vpack.c.bf16 %v70, %v69
    %v86 = vpack.c.bf16 %v72, %v71
    %v87 = vpack.c.bf16 %v74, %v73
    %v88 = vpack.c.bf16 %v76, %v75
    %v89 = vpack.c.bf16 %v78, %v77
    %v90 = vpack.c.bf16 %v80, %v79
    %v91 = vpack.c.bf16 %v82, %v81
    %v92 = vld [vmem:[#allocation2 + $0xa8] sm:$0x1]
    %v93 = vperm.slane %v92, 0
    %94 = vmatpush.bf16.msra.mxu0 %v91
    %95 = vmatpush.bf16.msra.mxu0 %v90
    %96 = vmatpush.bf16.msra.mxu0 %v89
    %97 = vmatpush.bf16.msra.mxu0 %v88
    %98 = vmatpush.bf16.msra.mxu0 %v87
    %99 = vmatpush.bf16.msra.mxu0 %v86
    %100 = vmatpush.bf16.msra.mxu0 %v85
    %101 = vmatpush.bf16.msra.mxu0 %v84
    %102 = vmatmul.bf16.gmra.mxu0 %v83
    %v103 = vpop.f32.mrf.mxu0
    %v104 = vadd.f32 %v93, %v103
    %v105 = vpop.f32.mrf.mxu0
    %106 = vdwg.mxu0
    %v107 = vmax.f32 %v104, 0.0
    %v108 = vld [vmem:[#allocation2 + $0xb0] sm:$0xff]
    %v109 = vld [vmem:[#allocation2 + $0xb8] sm:$0xff]
    %v110 = vld [vmem:[#allocation2 + $0xc0] sm:$0xff]
    %v111 = vld [vmem:[#allocation2 + $0xc8] sm:$0xff]
    %v112 = vld [vmem:[#allocation2 + $0xd0] sm:$0xff]
    %v113 = vld [vmem:[#allocation2 + $0xd8] sm:$0xff]
    %v114 = vld [vmem:[#allocation2 + $0xe0] sm:$0xff]
    %v115 = vld [vmem:[#allocation2 + $0xe8] sm:$0xff]
    %v116 = vpack.c.bf16 %v107, %v107
    %v117 = vpack.c.bf16 %v109, %v108
    %v118 = vpack.c.bf16 %v111, %v110
    %v119 = vpack.c.bf16 %v113, %v112
    %v120 = vpack.c.bf16 %v115, %v114
    %v121 = vld [vmem:[#allocation2 + $0xf0] sm:$0x1]
    %v122 = vperm.slane %v121, 0
    %vm123 = vcmask 523264
    %v125 = vsel %vm123, %v116, 0
    %127 = vmatpush.bf16.msra.mxu0 0
    %128 = vmatpush.bf16.msra.mxu0 0
    %129 = vmatpush.bf16.msra.mxu0 0
    %130 = vmatpush.bf16.msra.mxu0 0
    %131 = vmatpush.bf16.msra.mxu0 %v120
    %132 = vmatpush.bf16.msra.mxu0 %v119
    %133 = vmatpush.bf16.msra.mxu0 %v118
    %134 = vmatpush.bf16.msra.mxu0 %v117
    %135 = vmatmul.bf16.gmra.mxu0 %v125
    %v136 = vpop.f32.mrf.mxu0
    %v137 = vadd.f32 %v122, %v136
    %v138 = vpop.f32.mrf.mxu0
    %139 = vdwg.mxu0
    %v140 = vld [vmem:[%s1] sm:$0xff]
    %v141 = vld [vmem:[#allocation2 + $0x210] sm:$0x3f]
    %v142 = vpack.c.bf16 %v140, %v140
    %v143 = vpack.c.bf16 %v141, %v141
    %v144 = vld [vmem:[#allocation2 + $0x218] sm:$0x1]
    %v145 = vperm.slane %v144, 0
    %vm146 = vcmask 48128
    %v148 = vsel %vm146, %v142, 0
    %vm150 = vcmask 1042432
    %v152 = vsel %vm150, %v143, 0
    %154 = vmatpush.bf16.msra.mxu0 0
    %155 = vmatpush.bf16.msra.mxu0 0
    %156 = vmatpush.bf16.msra.mxu0 0
    %157 = vmatpush.bf16.msra.mxu0 0
    %158 = vmatpush.bf16.msra.mxu0 0
    %159 = vmatpush.bf16.msra.mxu0 0
    %160 = vmatpush.bf16.msra.mxu0 0
    %161 = vmatpush.bf16.msra.mxu0 %v152
    %162 = vmatmul.bf16.gmra.mxu0 %v148
    %v163 = vpop.f32.mrf.mxu0
    %v164 = vadd.f32 %v145, %v163
    %v165 = vpop.f32.mrf.mxu0
    %166 = vdwg.mxu0
    %v167 = vmax.f32 %v164, 0.0
    %v168 = vld [vmem:[%s2] sm:$0xff]
    %v169 = vld [vmem:[%s2 + $0x8] sm:$0xff]
    %v170 = vld [vmem:[%s2 + $0x10] sm:$0xff]
    %v171 = vld [vmem:[%s2 + $0x18] sm:$0xff]
    %v172 = vld [vmem:[%s2 + $0x20] sm:$0xff]
    %v173 = vld [vmem:[%s2 + $0x28] sm:$0xff]
    %v174 = vld [vmem:[%s2 + $0x30] sm:$0xff]
    %v175 = vld [vmem:[%s2 + $0x38] sm:$0xff]
    %v176 = vld [vmem:[#allocation2 + $0x220] sm:$0xff]
    %v177 = vpack.c.bf16 %v169, %v168
    %v178 = vpack.c.bf16 %v171, %v170
    %v179 = vpack.c.bf16 %v173, %v172
    %v180 = vpack.c.bf16 %v175, %v174
    %v181 = vpack.c.bf16 %v176, %v176
    %v182 = vld [vmem:[#allocation2 + $0x228] sm:$0x1]
    %v183 = vperm.slane %v182, 0
    %vm184 = vcmask 64512
    %v186 = vsel %vm184, %v177, 0
    %v189 = vsel %vm184, %v178, 0
    %v192 = vsel %vm184, %v179, 0
    %v195 = vsel %vm184, %v180, 0
    %vm197 = vcmask 1043456
    %v199 = vsel %vm197, %v181, 0
    %201 = vmatpush.bf16.msra.mxu0 0
    %202 = vmatpush.bf16.msra.mxu0 0
    %203 = vmatpush.bf16.msra.mxu0 0
    %204 = vmatpush.bf16.msra.mxu0 0
    %205 = vmatpush.bf16.msra.mxu0 0
    %206 = vmatpush.bf16.msra.mxu0 0
    %207 = vmatpush.bf16.msra.mxu0 0
    %208 = vmatpush.bf16.msra.mxu0 %v199
    %209 = vmatmul.bf16.gmra.mxu0 %v186
    %v210 = vpop.f32.mrf.mxu0
    %v211 = vadd.f32 %v183, %v210
    %v212 = vpop.f32.mrf.mxu0
    %v213 = vadd.f32 %v183, %v212
    %214 = vmatmul.bf16.gmra.mxu0 %v189
    %v215 = vpop.f32.mrf.mxu0
    %v216 = vadd.f32 %v183, %v215
    %v217 = vpop.f32.mrf.mxu0
    %v218 = vadd.f32 %v183, %v217
    %219 = vmatmul.bf16.gmra.mxu0 %v192
    %v220 = vpop.f32.mrf.mxu0
    %v221 = vadd.f32 %v183, %v220
    %v222 = vpop.f32.mrf.mxu0
    %v223 = vadd.f32 %v183, %v222
    %224 = vmatmul.bf16.gmra.mxu0 %v195
    %v225 = vpop.f32.mrf.mxu0
    %v226 = vadd.f32 %v183, %v225
    %v227 = vpop.f32.mrf.mxu0
    %v228 = vadd.f32 %v183, %v227
    %229 = vdwg.mxu0
    %v230 = vld [vmem:[#allocation2 + $0x230] sm:$0xff]
    %v231 = vld [vmem:[#allocation2 + $0x238] sm:$0xff]
    %v232 = vld [vmem:[#allocation2 + $0x240] sm:$0xff]
    %v233 = vld [vmem:[#allocation2 + $0x248] sm:$0xff]
    %v234 = vpack.c.bf16 %v231, %v230
    %v235 = vpack.c.bf16 %v233, %v232
    %v236 = vld [vmem:[#allocation2 + $0x250] sm:$0x1]
    %v237 = vpack.c.bf16 %v167, %v167
    %v239 = vsel %vm49, %v237, 0
    %241 = vmatpush.bf16.msra.mxu0 0
    %242 = vmatpush.bf16.msra.mxu0 0
    %243 = vmatpush.bf16.msra.mxu0 0
    %244 = vmatpush.bf16.msra.mxu0 0
    %245 = vmatpush.bf16.msra.mxu0 0
    %246 = vmatpush.bf16.msra.mxu0 0
    %247 = vmatpush.bf16.msra.mxu0 %v235
    %248 = vmatpush.bf16.msra.mxu0 %v234
    %249 = vmatmul.bf16.gmra.mxu0 %v239
    %v250 = vpop.f32.mrf.mxu0
    %v251 = vadd.f32 0.0, %v250
    %v252 = vpop.f32.mrf.mxu0
    %253 = vdwg.mxu0
    %v254 = vadd.f32 %v211, %v251
    %v255 = vxor.u32 %v254, 2147483648
    %v256 = vmul.f32 %v255, 1.442695
    %v257 = vpow.pop %v256
    %v258 = vadd.f32 %v257, 1.0
    %v259 = vrcp.pop %v258
    %v260 = vmul.f32 %v258, %v259
    %v261 = vsub.f32 1.0, %v260
    %v262 = vmul.f32 %v259, %v261
    %v263 = vadd.f32 %v259, %v262
    %vm264 = vweird.f32 %v258
    %vm265 = vweird.f32 %v259
    %vm266 = vmor %vm264, %vm265
    %v267 = vsel %vm266, %v259, %v263
    %v268 = vand.u32 2147483647, %v258
    %vm269 = vcmp.eq.f32.partialorder %v268, 8.507059e+37
    %v270 = vand.u32 %v258, 2147483648
    %v271 = vor.u32 1.1754944e-38, %v270
    %v272 = vsel %vm269, %v271, %v267
    %v273 = vmul.f32 1.0, %v272
    %v274 = vperm.slane %v236, 0
    %276 = vrot.lane.b32.xlu0 %v274, 64
    %v277 = vpop.permute.xlu0 %276
    %v279 = vadd.f32 %v251, %v277
    %281 = vrot.lane.b32.xlu0 %v279, 64
    %v282 = vpop.permute.xlu0 %281
    %v284 = vmul.f32 %v273, %v282
    %286 = vrot.lane.b32.xlu0 %v284, 64
    %v287 = vpop.permute.xlu0 %286
    %v289 = vadd.f32 %v211, %v287
    %v290 = vtanh.pop %v289
    %v291 = vsub.f32 1.0, %v273
    %293 = vrot.lane.b32.xlu0 %v290, 96
    %v294 = vpop.permute.xlu0 %293
    %v296 = vmul.f32 %v291, %v294
    %298 = vrot.lane.b32.xlu0 %v167, 32
    %v299 = vpop.permute.xlu0 %298
    %v301 = vmul.f32 %v273, %v299
    %v302 = vadd.f32 %v296, %v301
    %v303 = vpack.c.bf16 %v302, %v302
    %305 = vrot.lane.b32.xlu0 %v303, 96
    %v306 = vpop.permute.xlu0 %305
    %v308 = vsel %vm49, %v306, 0
    %310 = vmatpush.bf16.msra.mxu0 0
    %311 = vmatpush.bf16.msra.mxu0 0
    %312 = vmatpush.bf16.msra.mxu0 0
    %313 = vmatpush.bf16.msra.mxu0 0
    %314 = vmatpush.bf16.msra.mxu0 0
    %315 = vmatpush.bf16.msra.mxu0 0
    %316 = vmatpush.bf16.msra.mxu0 %v235
    %317 = vmatpush.bf16.msra.mxu0 %v234
    %318 = vmatmul.bf16.gmra.mxu0 %v308
    %v319 = vpop.f32.mrf.mxu0
    %v320 = vadd.f32 0.0, %v319
    %v321 = vpop.f32.mrf.mxu0
    %322 = vdwg.mxu0
    %v323 = vadd.f32 %v213, %v320
    %v324 = vxor.u32 %v323, 2147483648
    %v325 = vmul.f32 %v324, 1.442695
    %v326 = vpow.pop %v325
    %v327 = vadd.f32 %v326, 1.0
    %v328 = vrcp.pop %v327
    %v329 = vmul.f32 %v327, %v328
    %v330 = vsub.f32 1.0, %v329
    %v331 = vmul.f32 %v328, %v330
    %v332 = vadd.f32 %v328, %v331
    %vm333 = vweird.f32 %v327
    %vm334 = vweird.f32 %v328
    %vm335 = vmor %vm333, %vm334
    %v336 = vsel %vm335, %v328, %v332
    %v337 = vand.u32 2147483647, %v327
    %vm338 = vcmp.eq.f32.partialorder %v337, 8.507059e+37
    %v339 = vand.u32 %v327, 2147483648
    %v340 = vor.u32 1.1754944e-38, %v339
    %v341 = vsel %vm338, %v340, %v336
    %v342 = vmul.f32 1.0, %v341
    %v343 = vadd.f32 %v320, %v277
    %345 = vrot.lane.b32.xlu0 %v343, 64
    %v346 = vpop.permute.xlu0 %345
    %v348 = vmul.f32 %v342, %v346
    %350 = vrot.lane.b32.xlu0 %v348, 64
    %v351 = vpop.permute.xlu0 %350
    %v353 = vadd.f32 %v213, %v351
    %v354 = vtanh.pop %v353
    %v355 = vsub.f32 1.0, %v342
    %357 = vrot.lane.b32.xlu0 %v354, 96
    %v358 = vpop.permute.xlu0 %357
    %v360 = vmul.f32 %v355, %v358
    %v361 = vmul.f32 %v342, %v302
    %v362 = vadd.f32 %v360, %v361
    %v363 = vpack.c.bf16 %v362, %v362
    %365 = vrot.lane.b32.xlu0 %v363, 96
    %v366 = vpop.permute.xlu0 %365
    %v368 = vsel %vm49, %v366, 0
    %370 = vmatpush.bf16.msra.mxu0 0
    %371 = vmatpush.bf16.msra.mxu0 0
    %372 = vmatpush.bf16.msra.mxu0 0
    %373 = vmatpush.bf16.msra.mxu0 0
    %374 = vmatpush.bf16.msra.mxu0 0
    %375 = vmatpush.bf16.msra.mxu0 0
    %376 = vmatpush.bf16.msra.mxu0 %v235
    %377 = vmatpush.bf16.msra.mxu0 %v234
    %378 = vmatmul.bf16.gmra.mxu0 %v368
    %v379 = vpop.f32.mrf.mxu0
    %v380 = vadd.f32 0.0, %v379
    %v381 = vpop.f32.mrf.mxu0
    %382 = vdwg.mxu0
    %v383 = vadd.f32 %v216, %v380
    %v384 = vxor.u32 %v383, 2147483648
    %v385 = vmul.f32 %v384, 1.442695
    %v386 = vpow.pop %v385
    %v387 = vadd.f32 %v386, 1.0
    %v388 = vrcp.pop %v387
    %v389 = vmul.f32 %v387, %v388
    %v390 = vsub.f32 1.0, %v389
    %v391 = vmul.f32 %v388, %v390
    %v392 = vadd.f32 %v388, %v391
    %vm393 = vweird.f32 %v387
    %vm394 = vweird.f32 %v388
    %vm395 = vmor %vm393, %vm394
    %v396 = vsel %vm395, %v388, %v392
    %v397 = vand.u32 2147483647, %v387
    %vm398 = vcmp.eq.f32.partialorder %v397, 8.507059e+37
    %v399 = vand.u32 %v387, 2147483648
    %v400 = vor.u32 1.1754944e-38, %v399
    %v401 = vsel %vm398, %v400, %v396
    %v402 = vmul.f32 1.0, %v401
    %v403 = vadd.f32 %v380, %v277
    %405 = vrot.lane.b32.xlu0 %v403, 64
    %v406 = vpop.permute.xlu0 %405
    %v408 = vmul.f32 %v402, %v406
    %410 = vrot.lane.b32.xlu0 %v408, 64
    %v411 = vpop.permute.xlu0 %410
    %v413 = vadd.f32 %v216, %v411
    %v414 = vtanh.pop %v413
    %v415 = vsub.f32 1.0, %v402
    %417 = vrot.lane.b32.xlu0 %v414, 96
    %v418 = vpop.permute.xlu0 %417
    %v420 = vmul.f32 %v415, %v418
    %v421 = vmul.f32 %v402, %v362
    %v422 = vadd.f32 %v420, %v421
    %v423 = vpack.c.bf16 %v422, %v422
    %425 = vrot.lane.b32.xlu0 %v423, 96
    %v426 = vpop.permute.xlu0 %425
    %v428 = vsel %vm49, %v426, 0
    %430 = vmatpush.bf16.msra.mxu0 0
    %431 = vmatpush.bf16.msra.mxu0 0
    %432 = vmatpush.bf16.msra.mxu0 0
    %433 = vmatpush.bf16.msra.mxu0 0
    %434 = vmatpush.bf16.msra.mxu0 0
    %435 = vmatpush.bf16.msra.mxu0 0
    %436 = vmatpush.bf16.msra.mxu0 %v235
    %437 = vmatpush.bf16.msra.mxu0 %v234
    %438 = vmatmul.bf16.gmra.mxu0 %v428
    %v439 = vpop.f32.mrf.mxu0
    %v440 = vadd.f32 0.0, %v439
    %v441 = vpop.f32.mrf.mxu0
    %442 = vdwg.mxu0
    %v443 = vadd.f32 %v218, %v440
    %v444 = vxor.u32 %v443, 2147483648
    %v445 = vmul.f32 %v444, 1.442695
    %v446 = vpow.pop %v445
    %v447 = vadd.f32 %v446, 1.0
    %v448 = vrcp.pop %v447
    %v449 = vmul.f32 %v447, %v448
    %v450 = vsub.f32 1.0, %v449
    %v451 = vmul.f32 %v448, %v450
    %v452 = vadd.f32 %v448, %v451
    %vm453 = vweird.f32 %v447
    %vm454 = vweird.f32 %v448
    %vm455 = vmor %vm453, %vm454
    %v456 = vsel %vm455, %v448, %v452
    %v457 = vand.u32 2147483647, %v447
    %vm458 = vcmp.eq.f32.partialorder %v457, 8.507059e+37
    %v459 = vand.u32 %v447, 2147483648
    %v460 = vor.u32 1.1754944e-38, %v459
    %v461 = vsel %vm458, %v460, %v456
    %v462 = vmul.f32 1.0, %v461
    %v463 = vadd.f32 %v440, %v277
    %465 = vrot.lane.b32.xlu0 %v463, 64
    %v466 = vpop.permute.xlu0 %465
    %v468 = vmul.f32 %v462, %v466
    %470 = vrot.lane.b32.xlu0 %v468, 64
    %v471 = vpop.permute.xlu0 %470
    %v473 = vadd.f32 %v218, %v471
    %v474 = vtanh.pop %v473
    %v475 = vsub.f32 1.0, %v462
    %477 = vrot.lane.b32.xlu0 %v474, 96
    %v478 = vpop.permute.xlu0 %477
    %v480 = vmul.f32 %v475, %v478
    %v481 = vmul.f32 %v462, %v422
    %v482 = vadd.f32 %v480, %v481
    %v483 = vpack.c.bf16 %v482, %v482
    %485 = vrot.lane.b32.xlu0 %v483, 96
    %v486 = vpop.permute.xlu0 %485
    %v488 = vsel %vm49, %v486, 0
    %490 = vmatpush.bf16.msra.mxu0 0
    %491 = vmatpush.bf16.msra.mxu0 0
    %492 = vmatpush.bf16.msra.mxu0 0
    %493 = vmatpush.bf16.msra.mxu0 0
    %494 = vmatpush.bf16.msra.mxu0 0
    %495 = vmatpush.bf16.msra.mxu0 0
    %496 = vmatpush.bf16.msra.mxu0 %v235
    %497 = vmatpush.bf16.msra.mxu0 %v234
    %498 = vmatmul.bf16.gmra.mxu0 %v488
    %v499 = vpop.f32.mrf.mxu0
    %v500 = vadd.f32 0.0, %v499
    %v501 = vpop.f32.mrf.mxu0
    %502 = vdwg.mxu0
    %v503 = vadd.f32 %v221, %v500
    %v504 = vxor.u32 %v503, 2147483648
    %v505 = vmul.f32 %v504, 1.442695
    %v506 = vpow.pop %v505
    %v507 = vadd.f32 %v506, 1.0
    %v508 = vrcp.pop %v507
    %v509 = vmul.f32 %v507, %v508
    %v510 = vsub.f32 1.0, %v509
    %v511 = vmul.f32 %v508, %v510
    %v512 = vadd.f32 %v508, %v511
    %vm513 = vweird.f32 %v507
    %vm514 = vweird.f32 %v508
    %vm515 = vmor %vm513, %vm514
    %v516 = vsel %vm515, %v508, %v512
    %v517 = vand.u32 2147483647, %v507
    %vm518 = vcmp.eq.f32.partialorder %v517, 8.507059e+37
    %v519 = vand.u32 %v507, 2147483648
    %v520 = vor.u32 1.1754944e-38, %v519
    %v521 = vsel %vm518, %v520, %v516
    %v522 = vmul.f32 1.0, %v521
    %v523 = vadd.f32 %v500, %v277
    %525 = vrot.lane.b32.xlu0 %v523, 64
    %v526 = vpop.permute.xlu0 %525
    %v528 = vmul.f32 %v522, %v526
    %530 = vrot.lane.b32.xlu0 %v528, 64
    %v531 = vpop.permute.xlu0 %530
    %v533 = vadd.f32 %v221, %v531
    %v534 = vtanh.pop %v533
    %v535 = vsub.f32 1.0, %v522
    %537 = vrot.lane.b32.xlu0 %v534, 96
    %v538 = vpop.permute.xlu0 %537
    %v540 = vmul.f32 %v535, %v538
    %v541 = vmul.f32 %v522, %v482
    %v542 = vadd.f32 %v540, %v541
    %v543 = vpack.c.bf16 %v542, %v542
    %545 = vrot.lane.b32.xlu0 %v543, 96
    %v546 = vpop.permute.xlu0 %545
    %v548 = vsel %vm49, %v546, 0
    %550 = vmatpush.bf16.msra.mxu0 0
    %551 = vmatpush.bf16.msra.mxu0 0
    %552 = vmatpush.bf16.msra.mxu0 0
    %553 = vmatpush.bf16.msra.mxu0 0
    %554 = vmatpush.bf16.msra.mxu0 0
    %555 = vmatpush.bf16.msra.mxu0 0
    %556 = vmatpush.bf16.msra.mxu0 %v235
    %557 = vmatpush.bf16.msra.mxu0 %v234
    %558 = vmatmul.bf16.gmra.mxu0 %v548
    %v559 = vpop.f32.mrf.mxu0
    %v560 = vadd.f32 0.0, %v559
    %v561 = vpop.f32.mrf.mxu0
    %562 = vdwg.mxu0
    %v563 = vadd.f32 %v223, %v560
    %v564 = vxor.u32 %v563, 2147483648
    %v565 = vmul.f32 %v564, 1.442695
    %v566 = vpow.pop %v565
    %v567 = vadd.f32 %v566, 1.0
    %v568 = vrcp.pop %v567
    %v569 = vmul.f32 %v567, %v568
    %v570 = vsub.f32 1.0, %v569
    %v571 = vmul.f32 %v568, %v570
    %v572 = vadd.f32 %v568, %v571
    %vm573 = vweird.f32 %v567
    %vm574 = vweird.f32 %v568
    %vm575 = vmor %vm573, %vm574
    %v576 = vsel %vm575, %v568, %v572
    %v577 = vand.u32 2147483647, %v567
    %vm578 = vcmp.eq.f32.partialorder %v577, 8.507059e+37
    %v579 = vand.u32 %v567, 2147483648
    %v580 = vor.u32 1.1754944e-38, %v579
    %v581 = vsel %vm578, %v580, %v576
    %v582 = vmul.f32 1.0, %v581
    %v583 = vadd.f32 %v560, %v277
    %585 = vrot.lane.b32.xlu0 %v583, 64
    %v586 = vpop.permute.xlu0 %585
    %v588 = vmul.f32 %v582, %v586
    %590 = vrot.lane.b32.xlu0 %v588, 64
    %v591 = vpop.permute.xlu0 %590
    %v593 = vadd.f32 %v223, %v591
    %v594 = vtanh.pop %v593
    %v595 = vsub.f32 1.0, %v582
    %597 = vrot.lane.b32.xlu0 %v594, 96
    %v598 = vpop.permute.xlu0 %597
    %v600 = vmul.f32 %v595, %v598
    %v601 = vmul.f32 %v582, %v542
    %v602 = vadd.f32 %v600, %v601
    %v603 = vpack.c.bf16 %v602, %v602
    %605 = vrot.lane.b32.xlu0 %v603, 96
    %v606 = vpop.permute.xlu0 %605
    %v608 = vsel %vm49, %v606, 0
    %610 = vmatpush.bf16.msra.mxu0 0
    %611 = vmatpush.bf16.msra.mxu0 0
    %612 = vmatpush.bf16.msra.mxu0 0
    %613 = vmatpush.bf16.msra.mxu0 0
    %614 = vmatpush.bf16.msra.mxu0 0
    %615 = vmatpush.bf16.msra.mxu0 0
    %616 = vmatpush.bf16.msra.mxu0 %v235
    %617 = vmatpush.bf16.msra.mxu0 %v234
    %618 = vmatmul.bf16.gmra.mxu0 %v608
    %v619 = vpop.f32.mrf.mxu0
    %v620 = vadd.f32 0.0, %v619
    %v621 = vpop.f32.mrf.mxu0
    %622 = vdwg.mxu0
    %v623 = vadd.f32 %v226, %v620
    %v624 = vxor.u32 %v623, 2147483648
    %v625 = vmul.f32 %v624, 1.442695
    %v626 = vpow.pop %v625
    %v627 = vadd.f32 %v626, 1.0
    %v628 = vrcp.pop %v627
    %v629 = vmul.f32 %v627, %v628
    %v630 = vsub.f32 1.0, %v629
    %v631 = vmul.f32 %v628, %v630
    %v632 = vadd.f32 %v628, %v631
    %vm633 = vweird.f32 %v627
    %vm634 = vweird.f32 %v628
    %vm635 = vmor %vm633, %vm634
    %v636 = vsel %vm635, %v628, %v632
    %v637 = vand.u32 2147483647, %v627
    %vm638 = vcmp.eq.f32.partialorder %v637, 8.507059e+37
    %v639 = vand.u32 %v627, 2147483648
    %v640 = vor.u32 1.1754944e-38, %v639
    %v641 = vsel %vm638, %v640, %v636
    %v642 = vmul.f32 1.0, %v641
    %v643 = vadd.f32 %v620, %v277
    %645 = vrot.lane.b32.xlu0 %v643, 64
    %v646 = vpop.permute.xlu0 %645
    %v648 = vmul.f32 %v642, %v646
    %650 = vrot.lane.b32.xlu0 %v648, 64
    %v651 = vpop.permute.xlu0 %650
    %v653 = vadd.f32 %v226, %v651
    %v654 = vtanh.pop %v653
    %v655 = vsub.f32 1.0, %v642
    %657 = vrot.lane.b32.xlu0 %v654, 96
    %v658 = vpop.permute.xlu0 %657
    %v660 = vmul.f32 %v655, %v658
    %v661 = vmul.f32 %v642, %v602
    %v662 = vadd.f32 %v660, %v661
    %v663 = vpack.c.bf16 %v662, %v662
    %665 = vrot.lane.b32.xlu0 %v663, 96
    %v666 = vpop.permute.xlu0 %665
    %v668 = vsel %vm49, %v666, 0
    %670 = vmatpush.bf16.msra.mxu0 0
    %671 = vmatpush.bf16.msra.mxu0 0
    %672 = vmatpush.bf16.msra.mxu0 0
    %673 = vmatpush.bf16.msra.mxu0 0
    %674 = vmatpush.bf16.msra.mxu0 0
    %675 = vmatpush.bf16.msra.mxu0 0
    %676 = vmatpush.bf16.msra.mxu0 %v235
    %677 = vmatpush.bf16.msra.mxu0 %v234
    %678 = vmatmul.bf16.gmra.mxu0 %v668
    %v679 = vpop.f32.mrf.mxu0
    %v680 = vadd.f32 0.0, %v679
    %v681 = vpop.f32.mrf.mxu0
    %682 = vdwg.mxu0
    %v683 = vadd.f32 %v228, %v680
    %v684 = vxor.u32 %v683, 2147483648
    %v685 = vmul.f32 %v684, 1.442695
    %v686 = vpow.pop %v685
    %v687 = vadd.f32 %v686, 1.0
    %v688 = vrcp.pop %v687
    %v689 = vmul.f32 %v687, %v688
    %v690 = vsub.f32 1.0, %v689
    %v691 = vmul.f32 %v688, %v690
    %v692 = vadd.f32 %v688, %v691
    %vm693 = vweird.f32 %v687
    %vm694 = vweird.f32 %v688
    %vm695 = vmor %vm693, %vm694
    %v696 = vsel %vm695, %v688, %v692
    %v697 = vand.u32 2147483647, %v687
    %vm698 = vcmp.eq.f32.partialorder %v697, 8.507059e+37
    %v699 = vand.u32 %v687, 2147483648
    %v700 = vor.u32 1.1754944e-38, %v699
    %v701 = vsel %vm698, %v700, %v696
    %v702 = vmul.f32 1.0, %v701
    %v703 = vadd.f32 %v680, %v277
    %705 = vrot.lane.b32.xlu0 %v703, 64
    %v706 = vpop.permute.xlu0 %705
    %v708 = vmul.f32 %v702, %v706
    %710 = vrot.lane.b32.xlu0 %v708, 64
    %v711 = vpop.permute.xlu0 %710
    %v713 = vadd.f32 %v228, %v711
    %v714 = vtanh.pop %v713
    %v715 = vsub.f32 1.0, %v702
    %717 = vrot.lane.b32.xlu0 %v714, 96
    %v718 = vpop.permute.xlu0 %717
    %v720 = vmul.f32 %v715, %v718
    %v721 = vmul.f32 %v702, %v662
    %v722 = vadd.f32 %v720, %v721
    %v723 = vld [vmem:[#allocation2 + $0xf8] sm:$0xff]
    %v724 = vld [vmem:[#allocation2 + $0x100] sm:$0xff]
    %v725 = vld [vmem:[#allocation2 + $0x108] sm:$0xff]
    %v726 = vld [vmem:[#allocation2 + $0x110] sm:$0xff]
    %v727 = vpack.c.bf16 %v724, %v723
    %v728 = vpack.c.bf16 %v726, %v725
    %v729 = vld [vmem:[#allocation2 + $0x118] sm:$0xff]
    %v730 = vld [vmem:[#allocation2 + $0x120] sm:$0xff]
    %v731 = vld [vmem:[#allocation2 + $0x128] sm:$0xff]
    %v732 = vld [vmem:[#allocation2 + $0x130] sm:$0xff]
    %v733 = vpack.c.bf16 %v722, %v722
    %v734 = vpack.c.bf16 %v730, %v729
    %v735 = vpack.c.bf16 %v732, %v731
    %737 = vrot.lane.b32.xlu0 %v733, 96
    %v738 = vpop.permute.xlu0 %737
    %v740 = vsel %vm49, %v738, 0
    %742 = vmatpush.bf16.msra.mxu0 0
    %743 = vmatpush.bf16.msra.mxu0 0
    %744 = vmatpush.bf16.msra.mxu0 0
    %745 = vmatpush.bf16.msra.mxu0 0
    %746 = vmatpush.bf16.msra.mxu0 0
    %747 = vmatpush.bf16.msra.mxu0 0
    %748 = vmatpush.bf16.msra.mxu0 %v735
    %749 = vmatpush.bf16.msra.mxu0 %v734
    %750 = vmatmul.bf16.gmra.mxu0 %v740
    %v751 = vpop.f32.mrf.mxu0
    %v752 = vadd.f32 0.0, %v751
    %v753 = vpop.f32.mrf.mxu0
    %754 = vdwg.mxu0
    %755 = vmatpush.bf16.msra.mxu0 0
    %756 = vmatpush.bf16.msra.mxu0 0
    %757 = vmatpush.bf16.msra.mxu0 0
    %758 = vmatpush.bf16.msra.mxu0 0
    %759 = vmatpush.bf16.msra.mxu0 0
    %760 = vmatpush.bf16.msra.mxu0 0
    %761 = vmatpush.bf16.msra.mxu0 %v728
    %762 = vmatpush.bf16.msra.mxu0 %v727
    %763 = vmatmul.bf16.gmra.mxu0 %v51
    %v764 = vpop.f32.mrf.mxu0
    %v765 = vadd.f32 %v752, %v764
    %v766 = vpop.f32.mrf.mxu0
    %767 = vdwg.mxu0
    %v768 = vld [vmem:[#allocation2 + $0x138] sm:$0x1]
    %v769 = vperm.slane %v768, 0
    %v770 = vadd.f32 %v765, %v769
    %v771 = vmax.f32 %v770, 0.0
    %v772 = vld [vmem:[#allocation2 + $0x140] sm:$0xff]
    %v773 = vld [vmem:[#allocation2 + $0x148] sm:$0xff]
    %v774 = vld [vmem:[#allocation2 + $0x150] sm:$0xff]
    %v775 = vld [vmem:[#allocation2 + $0x158] sm:$0xff]
    %v776 = vld [vmem:[#allocation2 + $0x160] sm:$0xff]
    %v777 = vld [vmem:[#allocation2 + $0x168] sm:$0xff]
    %v778 = vld [vmem:[#allocation2 + $0x170] sm:$0xff]
    %v779 = vld [vmem:[#allocation2 + $0x178] sm:$0xff]
    %v780 = vld [vmem:[#allocation2 + $0x180] sm:$0xff]
    %v781 = vld [vmem:[#allocation2 + $0x188] sm:$0xff]
    %v782 = vld [vmem:[#allocation2 + $0x190] sm:$0xff]
    %v783 = vld [vmem:[#allocation2 + $0x198] sm:$0xff]
    %v784 = vld [vmem:[#allocation2 + $0x1a0] sm:$0xff]
    %v785 = vld [vmem:[#allocation2 + $0x1a8] sm:$0xff]
    %v786 = vld [vmem:[#allocation2 + $0x1b0] sm:$0xff]
    %v787 = vld [vmem:[#allocation2 + $0x1b8] sm:$0xff]
    %v788 = vpack.c.bf16 %v771, %v771
    %v789 = vpack.c.bf16 %v773, %v772
    %v790 = vpack.c.bf16 %v775, %v774
    %v791 = vpack.c.bf16 %v777, %v776
    %v792 = vpack.c.bf16 %v779, %v778
    %v793 = vpack.c.bf16 %v781, %v780
    %v794 = vpack.c.bf16 %v783, %v782
    %v795 = vpack.c.bf16 %v785, %v784
    %v796 = vpack.c.bf16 %v787, %v786
    %v797 = vld [vmem:[#allocation2 + $0x1c0] sm:$0x1]
    %v798 = vperm.slane %v797, 0
    %799 = vmatpush.bf16.msra.mxu0 %v796
    %800 = vmatpush.bf16.msra.mxu0 %v795
    %801 = vmatpush.bf16.msra.mxu0 %v794
    %802 = vmatpush.bf16.msra.mxu0 %v793
    %803 = vmatpush.bf16.msra.mxu0 %v792
    %804 = vmatpush.bf16.msra.mxu0 %v791
    %805 = vmatpush.bf16.msra.mxu0 %v790
    %806 = vmatpush.bf16.msra.mxu0 %v789
    %807 = vmatmul.bf16.gmra.mxu0 %v788
    %v808 = vpop.f32.mrf.mxu0
    %v809 = vadd.f32 %v798, %v808
    %v810 = vpop.f32.mrf.mxu0
    %811 = vdwg.mxu0
    %v812 = vmax.f32 %v809, 0.0
    %v813 = vld [vmem:[#allocation2 + $0x1c8] sm:$0xff]
    %v814 = vld [vmem:[#allocation2 + $0x1d0] sm:$0xff]
    %v815 = vld [vmem:[#allocation2 + $0x1d8] sm:$0xff]
    %v816 = vld [vmem:[#allocation2 + $0x1e0] sm:$0xff]
    %v817 = vld [vmem:[#allocation2 + $0x1e8] sm:$0xff]
    %v818 = vld [vmem:[#allocation2 + $0x1f0] sm:$0xff]
    %v819 = vld [vmem:[#allocation2 + $0x1f8] sm:$0xff]
    %v820 = vld [vmem:[#allocation2 + $0x200] sm:$0xff]
    %v821 = vpack.c.bf16 %v812, %v812
    %v822 = vpack.c.bf16 %v814, %v813
    %v823 = vpack.c.bf16 %v816, %v815
    %v824 = vpack.c.bf16 %v818, %v817
    %v825 = vpack.c.bf16 %v820, %v819
    %v826 = vld [vmem:[#allocation2 + $0x208] sm:$0x1]
    %v827 = vperm.slane %v826, 0
    %v829 = vsel %vm123, %v821, 0
    %831 = vmatpush.bf16.msra.mxu0 0
    %832 = vmatpush.bf16.msra.mxu0 0
    %833 = vmatpush.bf16.msra.mxu0 0
    %834 = vmatpush.bf16.msra.mxu0 0
    %835 = vmatpush.bf16.msra.mxu0 %v825
    %836 = vmatpush.bf16.msra.mxu0 %v824
    %837 = vmatpush.bf16.msra.mxu0 %v823
    %838 = vmatpush.bf16.msra.mxu0 %v822
    %839 = vmatmul.bf16.gmra.mxu0 %v829
    %v840 = vpop.f32.mrf.mxu0
    %v841 = vadd.f32 %v827, %v840
    %v842 = vpop.f32.mrf.mxu0
    %843 = vdwg.mxu0
    %v844 = vsub.f32 %v841, %v137
    %v845 = vmul.f32 %v844, 1.442695
    %v846 = vpow.pop %v845
    %v847 = vsub.f32 %v137, %v841
    %v848 = vmul.f32 %v847, %v847
    %v849 = vsub.f32 0.0, %v137
    %v850 = vmul.f32 %v849, 1.442695
    %v851 = vpow.pop %v850
    %853 = vrot.lane.b32.xlu0 %v851, 120
    %v854 = vpop.permute.xlu0 %853
    %v856 = vmul.f32 %v848, %v854
    %858 = vrot.lane.b32.xlu0 %v856, 8
    %v859 = vpop.permute.xlu0 %858
    %v861 = vadd.f32 %v846, %v859
    %v862 = vsub.f32 %v861, 1.0
    %v863 = vadd.f32 %v862, %v847
    %v864 = vmul.f32 %v863, 0.5
    %866 = vrot.lane.b32.xlu0 %v864, 120
    %v867 = vpop.permute.xlu0 %866
    %v869 = vsel %vm184, %v867, 0.0
    %870 = vadd.xlane.f32.xlu0 %v869
    %v871 = vpop.xlane.xlu0 %870
    %vm872 = vcmask 7168
    %873 = vst.msk [vmem:[%s6] sm:$0xff] %vm872, %v871
    %v874 = vmul.f32 %v841, 0.5
    %v875 = vmul.f32 %v874, 1.442695
    %v876 = vpow.pop %v875
    %v878 = vrot.slane %v841, 1
    %v879 = vrot.slane %v841, 2
    %v880 = vrot.slane %v841, 3
    %v881 = vrot.slane %v841, 4
    %v882 = vrot.slane %v841, 5
    %v883 = vrot.slane %v841, 6
    %v884 = vrot.slane %v841, 7
    %v885 = vld [vmem:[%s3] sm:$0xff]
    %v886 = vld [vmem:[%s3 + $0x8] sm:$0xff]
    %v887 = vld [vmem:[%s3 + $0x10] sm:$0xff]
    %v888 = vld [vmem:[%s3 + $0x18] sm:$0xff]
    %v889 = vld [vmem:[%s3 + $0x20] sm:$0xff]
    %v890 = vld [vmem:[%s3 + $0x28] sm:$0xff]
    %v891 = vld [vmem:[%s3 + $0x30] sm:$0xff]
    %v892 = vld [vmem:[%s3 + $0x38] sm:$0xff]
    %v894 = vrot.slane %v876, 1
    %v895 = vrot.slane %v876, 2
    %v896 = vrot.slane %v876, 3
    %v897 = vrot.slane %v876, 4
    %v898 = vrot.slane %v876, 5
    %v899 = vrot.slane %v876, 6
    %v900 = vrot.slane %v876, 7
    %v901 = vperm.slane %v876, 0
    %v902 = vperm.slane %v894, 0
    %v903 = vperm.slane %v895, 0
    %v904 = vperm.slane %v896, 0
    %v905 = vperm.slane %v897, 0
    %v906 = vperm.slane %v898, 0
    %v907 = vperm.slane %v899, 0
    %v908 = vperm.slane %v900, 0
    %909 = vrot.lane.b32.xlu0 %v901, 120
    %v910 = vpop.permute.xlu0 %909
    %911 = vrot.lane.b32.xlu0 %v902, 120
    %v912 = vpop.permute.xlu0 %911
    %913 = vrot.lane.b32.xlu0 %v903, 120
    %v914 = vpop.permute.xlu0 %913
    %915 = vrot.lane.b32.xlu0 %v904, 120
    %v916 = vpop.permute.xlu0 %915
    %917 = vrot.lane.b32.xlu0 %v905, 120
    %v918 = vpop.permute.xlu0 %917
    %919 = vrot.lane.b32.xlu0 %v906, 120
    %v920 = vpop.permute.xlu0 %919
    %921 = vrot.lane.b32.xlu0 %v907, 120
    %v922 = vpop.permute.xlu0 %921
    %923 = vrot.lane.b32.xlu0 %v908, 120
    %v924 = vpop.permute.xlu0 %923
    %v933 = vmul.f32 %v885, %v910
    %v934 = vmul.f32 %v886, %v912
    %v935 = vmul.f32 %v887, %v914
    %v936 = vmul.f32 %v888, %v916
    %v937 = vmul.f32 %v889, %v918
    %v938 = vmul.f32 %v890, %v920
    %v939 = vmul.f32 %v891, %v922
    %v940 = vmul.f32 %v892, %v924
    %v941 = vperm.slane %v841, 0
    %v942 = vperm.slane %v878, 0
    %v943 = vperm.slane %v879, 0
    %v944 = vperm.slane %v880, 0
    %v945 = vperm.slane %v881, 0
    %v946 = vperm.slane %v882, 0
    %v947 = vperm.slane %v883, 0
    %v948 = vperm.slane %v884, 0
    %v957 = vadd.f32 %v941, %v933
    %v958 = vadd.f32 %v942, %v934
    %v959 = vadd.f32 %v943, %v935
    %v960 = vadd.f32 %v944, %v936
    %v961 = vadd.f32 %v945, %v937
    %v962 = vadd.f32 %v946, %v938
    %v963 = vadd.f32 %v947, %v939
    %v964 = vadd.f32 %v948, %v940
    %965 = vst.msk [vmem:[%s5] sm:$0xff] %vm184, %v957
    %966 = vst.msk [vmem:[%s5 + $0x8] sm:$0xff] %vm184, %v958
    %967 = vst.msk [vmem:[%s5 + $0x10] sm:$0xff] %vm184, %v959
    %968 = vst.msk [vmem:[%s5 + $0x18] sm:$0xff] %vm184, %v960
    %969 = vst.msk [vmem:[%s5 + $0x20] sm:$0xff] %vm184, %v961
    %970 = vst.msk [vmem:[%s5 + $0x28] sm:$0xff] %vm184, %v962
    %971 = vst.msk [vmem:[%s5 + $0x30] sm:$0xff] %vm184, %v963
    %972 = vst.msk [vmem:[%s5 + $0x38] sm:$0xff] %vm184, %v964
    // Predicated region
    $region26: #{bitrap_np_forward.1} parent=1 // pred_check
      _
    $region27: #{bitrap_np_forward.1} parent=1 // pred_check_branch
      %974 = sbr.rel (0) target = $region29
    $region28: #{bitrap_np_forward.1} parent=1 // pred_region
      _
    $region29: #{bitrap_np_forward.1} parent=1 // pred_fallthru
      _
    // Predicated region
    $region30: #{bitrap_np_forward.1} parent=1 // pred_check
      _
    $region31: #{bitrap_np_forward.1} parent=1 // pred_check_branch
      %976 = sbr.rel (0) target = $region33
    $region32: #{bitrap_np_forward.1} parent=1 // pred_region
      _
    $region33: #{bitrap_np_forward.1} parent=1 // pred_fallthru
      _
    // Predicated region
    $region34: #{bitrap_np_forward.1} parent=1 // pred_check
      _
    $region35: #{bitrap_np_forward.1} parent=1 // pred_check_branch
      %978 = sbr.rel (0) target = $region37
    $region36: #{bitrap_np_forward.1} parent=1 // pred_region
      _
    $region37: #{bitrap_np_forward.1} parent=1 // pred_fallthru
      _
    // Predicated region
    $region38: #{bitrap_np_forward.1} parent=1 // pred_check
      _
    $region39: #{bitrap_np_forward.1} parent=1 // pred_check_branch
      %980 = sbr.rel (0) target = $region41
    $region40: #{bitrap_np_forward.1} parent=1 // pred_region
      _
    $region41: #{bitrap_np_forward.1} parent=1 // pred_fallthru
      _
    %981 = vsyncpa [#allocation3], 1

</llo_original>
